<compile_context>
chip_gen: v7x
topology: tpu7x:2x2x1
jax: 0.10.0
libtpu: 0.0.40
codegen_flags: <defaults>
</compile_context>

<pallas_src>
import functools

import jax
import jax.numpy as jnp
from jax.experimental import pallas as pl
from jax.experimental.pallas import tpu as pltpu

# ------------------------- scaled-down config -------------------------------
BATCH = 2
SEQ = 16
HIDDEN = 128                       # transformer_hidden_size (scaled from 512)
NUM_HEADS = 4                      # multi_head_num          (scaled from 8)
HEAD_DIM = HIDDEN // NUM_HEADS     # qkv_hidden_size
FFN = 4 * HIDDEN
EPS = 1e-5
NEG_INF = -1.0e9
BATCH_BLOCK = 1                    # batches per grid step ("parallel" grid)


# ------------------------------ Pallas kernel -------------------------------
def encoder_layer_kernel(
    x_ref,      # (BB*S, H)  f32   rows of this batch block
    mask_ref,   # (BB, S, 1) f32   nonzero -> mask the whole query row
    wqkv_ref,   # (H, 3H)    bf16  fused [wq | wk | wv]
    wo_ref,     # (H, H)     bf16
    gamma_ref,  # (1, H)     f32
    beta_ref,   # (1, H)     f32
    w1_ref,     # (H, 4H)    bf16
    b1_ref,     # (1, 4H)    f32
    w2_ref,     # (4H, H)    bf16
    b2_ref,     # (1, H)     f32
    out_ref,    # (BB*S, H)  f32
    *, num_heads,
):
    BS, H = x_ref.shape
    Bb, S, _ = mask_ref.shape
    NH = num_heads
    dh = H // NH
    G = Bb * NH

    x = x_ref[...]                                  # f32, kept for residual
    x_bf = x.astype(jnp.bfloat16)

    # ---- fused lane-dense QKV projection: one (BS,H)x(H,3H) MXU pass -------
    qkv = jnp.dot(x_bf, wqkv_ref[...],
                  preferred_element_type=jnp.float32)            # (BS, 3H) f32
    q, k, v = qkv[:, :H], qkv[:, H:2 * H], qkv[:, 2 * H:]

    def split_heads(t):                              # (BS, H) -> (G, S, dh)
        return (t.reshape(Bb, S, NH, dh)
                 .transpose(0, 2, 1, 3)
                 .reshape(G, S, dh)
                 .astype(jnp.bfloat16))

    qh, kh, vh = split_heads(q), split_heads(k), split_heads(v)

    # ---- attention scores + masked_fill + softmax (all f32 on VPU/EUP) -----
    scores = jnp.einsum("gqd,gkd->gqk", qh, kh,
                        preferred_element_type=jnp.float32)      # (G, S, S)
    scores = scores.reshape(Bb, NH, S, S)
    # masked_fill semantics: mask[b, i] != 0 masks query row i for ALL keys
    # (a fully-masked row becomes uniform after softmax).  An additive -1e9
    # bias would NOT reproduce that, so keep compare+select with the
    # per-batch (not per-head) mask, broadcast over heads/keys in-kernel.
    scores = jnp.where(mask_ref[...][:, None, :, :] > 0.0, NEG_INF, scores)

    m = jnp.max(scores, axis=-1, keepdims=True)
    e = jnp.exp(scores - m)
    denom = jnp.sum(e, axis=-1, keepdims=True)
    r = pl.reciprocal(denom, approx=True)            # EUP slot
    r = r * (2.0 - denom * r)                        # Newton step -> f32 accuracy
    probs = (e * r).reshape(G, S, S)

    attn = jnp.einsum("gqk,gkd->gqd", probs.astype(jnp.bfloat16), vh,
                      preferred_element_type=jnp.float32)        # (G, S, dh)

    # ---- combine heads folded into the output projection: K = NH*dh = H ----
    attn_c = (attn.reshape(Bb, NH, S, dh)
                  .transpose(0, 2, 1, 3)
                  .reshape(BS, H)
                  .astype(jnp.bfloat16))
    mha = jnp.dot(attn_c, wo_ref[...],
                  preferred_element_type=jnp.float32)            # (BS, H)

    gamma = gamma_ref[0]
    beta = beta_ref[0]

    def layernorm(y):
        mu = jnp.mean(y, axis=-1, keepdims=True)
        var = jnp.mean((y - mu) ** 2, axis=-1, keepdims=True)
        return (y - mu) * jax.lax.rsqrt(var + EPS) * gamma + beta

    # ---- residual + layernorm #1 --------------------------------------------
    h1 = layernorm(x + mha)

    # ---- FFN: Linear(H->4H) + ReLU + Linear(4H->H), bf16 MXU / f32 accum ----
    ff = jnp.dot(h1.astype(jnp.bfloat16), w1_ref[...],
                 preferred_element_type=jnp.float32) + b1_ref[0]
    ff = jnp.maximum(ff, 0.0)
    ff2 = jnp.dot(ff.astype(jnp.bfloat16), w2_ref[...],
                  preferred_element_type=jnp.float32) + b2_ref[0]

    # ---- residual + layernorm #2, lane-dense (BB*S, 128) store --------------
    out_ref[...] = layernorm(h1 + ff2)


# ------------------------------ wrapper --------------------------------------
@jax.jit
def transformer_encoder_layer(x, attention_mask, params):
    """x: (B, S, H) f32; attention_mask: (B, S) int (0/1)."""
    B, S, H = x.shape
    BS = B * S
    n_blocks = B // BATCH_BLOCK
    rows = BATCH_BLOCK * S

    x2 = x.reshape(BS, H)
    mask = attention_mask.astype(jnp.float32)[:, :, None]         # (B, S, 1)

    bf = jnp.bfloat16
    wqkv = jnp.concatenate([params["wq"], params["wk"], params["wv"]],
                           axis=1).astype(bf)                      # (H, 3H)
    wo = params["wo"].astype(bf)                                   # (H, H)
    w1 = params["w1"].astype(bf)
    w2 = params["w2"].astype(bf)

    def resident(shape):   # constant index map -> block stays in VMEM across steps
        return pl.BlockSpec(shape, lambda i: (0,) * len(shape))

    kernel = functools.partial(encoder_layer_kernel, num_heads=NUM_HEADS)

    out = pl.pallas_call(
        kernel,
        out_shape=jax.ShapeDtypeStruct((BS, H), jnp.float32),
        grid=(n_blocks,),
        in_specs=[
            pl.BlockSpec((rows, H), lambda i: (i, 0)),             # x (row block)
            pl.BlockSpec((BATCH_BLOCK, S, 1), lambda i: (i, 0, 0)),# mask
            resident((H, 3 * H)),                                  # wqkv (bf16)
            resident((H, H)),                                      # wo   (bf16)
            resident((1, H)),                                      # gamma
            resident((1, H)),                                      # beta
            resident((H, FFN)),                                    # w1   (bf16)
            resident((1, FFN)),                                    # b1
            resident((FFN, H)),                                    # w2   (bf16)
            resident((1, H)),                                      # b2
        ],
        out_specs=pl.BlockSpec((rows, H), lambda i: (i, 0)),
        compiler_params=pltpu.CompilerParams(
            dimension_semantics=("parallel",),
            vmem_limit_bytes=32 * 1024 * 1024,
        ),
    )(x2, mask, wqkv, wo, params["gamma"], params["beta"],
      w1, params["b1"], w2, params["b2"])

    return out.reshape(B, S, H)


# --------------------------- pure-JAX reference ------------------------------
def reference_encoder_layer(x, attention_mask, params):
    """Mirror of the PyTorch forward.  Matmul operands are cast to bf16 with
    f32 accumulation (same numerics as the kernel); softmax / LayerNorm math
    stays f32, so the kernel/reference comparison is tight."""
    B, S, H = x.shape
    NH, dh = NUM_HEADS, HEAD_DIM
    bf = jnp.bfloat16

    def mm(a, b):
        return jnp.einsum("...i,ij->...j", a.astype(bf), b.astype(bf),
                          preferred_element_type=jnp.float32)

    q, k, v = mm(x, params["wq"]), mm(x, params["wk"]), mm(x, params["wv"])

    def split(t):  # (B,S,H) -> (B,nh,S,dh)
        return t.reshape(B, S, NH, dh).transpose(0, 2, 1, 3)

    qh, kh, vh = split(q), split(k), split(v)
    score = jnp.einsum("bhqd,bhkd->bhqk", qh.astype(bf), kh.astype(bf),
                       preferred_element_type=jnp.float32)
    mask = attention_mask[:, None, :, None].astype(jnp.float32)   # (B,1,S,1)
    score = jnp.where(mask > 0.0, NEG_INF, score)
    w = jax.nn.softmax(score, axis=-1)
    o = jnp.einsum("bhqk,bhkd->bhqd", w.astype(bf), vh.astype(bf),
                   preferred_element_type=jnp.float32)
    attn = o.transpose(0, 2, 1, 3).reshape(B, S, H)
    mha = mm(attn, params["wo"])

    def layernorm(y):
        mu = jnp.mean(y, axis=-1, keepdims=True)
        var = jnp.mean((y - mu) ** 2, axis=-1, keepdims=True)
        return (y - mu) * jax.lax.rsqrt(var + EPS) * params["gamma"][0] + params["beta"][0]

    h1 = layernorm(x + mha)
    ff = jnp.maximum(mm(h1, params["w1"]) + params["b1"][0], 0.0)
    ff2 = mm(ff, params["w2"]) + params["b2"][0]
    return layernorm(h1 + ff2)


# ------------------------------- main -----------------------------------------
if __name__ == "__main__":
    key = jax.random.PRNGKey(0)
    keys = jax.random.split(key, 10)

    def xavier(k, shape):
        fan_in, fan_out = shape
        limit = (6.0 / (fan_in + fan_out)) ** 0.5
        return jax.random.uniform(k, shape, jnp.float32, -limit, limit)

    params = {
        "wq": xavier(keys[0], (HIDDEN, HIDDEN)),
        "wk": xavier(keys[1], (HIDDEN, HIDDEN)),
        "wv": xavier(keys[2], (HIDDEN, HIDDEN)),
        "wo": xavier(keys[3], (HIDDEN, HIDDEN)),
        "gamma": jnp.ones((1, HIDDEN), jnp.float32),
        "beta": jnp.zeros((1, HIDDEN), jnp.float32),
        "w1": xavier(keys[4], (HIDDEN, FFN)),
        "b1": (0.02 * jax.random.normal(keys[5], (1, FFN))).astype(jnp.float32),
        "w2": xavier(keys[6], (FFN, HIDDEN)),
        "b2": (0.02 * jax.random.normal(keys[7], (1, HIDDEN))).astype(jnp.float32),
    }

    x = jax.random.normal(keys[8], (BATCH, SEQ, HIDDEN), jnp.float32)
    attention_mask = jax.random.randint(keys[9], (BATCH, SEQ), 0, 2, jnp.int32)

    out = jax.block_until_ready(transformer_encoder_layer(x, attention_mask, params))
    ref = reference_encoder_layer(x, attention_mask, params)

    assert out.shape == (BATCH, SEQ, HIDDEN)
    assert jnp.allclose(out, ref, atol=5e-3, rtol=5e-3), "mismatch vs JAX reference"

    print("KERNEL_OK")
</pallas_src>

<mosaic_0001>
module attributes {stable_mosaic.version = 11 : i64} {
  func.func @encoder_layer_kernel(%arg0: i32, %arg1: memref<16x128xf32, #tpu.memory_space<vmem>>, %arg2: memref<1x16x1xf32, #tpu.memory_space<vmem>>, %arg3: memref<128x384xbf16, #tpu.memory_space<vmem>>, %arg4: memref<128x128xbf16, #tpu.memory_space<vmem>>, %arg5: memref<1x128xf32, #tpu.memory_space<vmem>>, %arg6: memref<1x128xf32, #tpu.memory_space<vmem>>, %arg7: memref<128x512xbf16, #tpu.memory_space<vmem>>, %arg8: memref<1x512xf32, #tpu.memory_space<vmem>>, %arg9: memref<512x128xbf16, #tpu.memory_space<vmem>>, %arg10: memref<1x128xf32, #tpu.memory_space<vmem>>, %arg11: memref<16x128xf32, #tpu.memory_space<vmem>>) attributes {dimension_semantics = [#tpu.dimension_semantics<parallel>], iteration_bounds = array<i64: 2>, scalar_prefetch = 0 : i64, scratch_operands = 0 : i64, tpu.core_type = #tpu.core_type<tc>, window_params = [{transform_indices = @transform_0, window_bounds = array<i64: 16, 128>}, {transform_indices = @transform_1, window_bounds = array<i64: 1, 16, 1>}, {pipeline_mode = #tpu.pipeline_mode<synchronous>, transform_indices = @transform_2, window_bounds = array<i64: 128, 384>}, {pipeline_mode = #tpu.pipeline_mode<synchronous>, transform_indices = @transform_3, window_bounds = array<i64: 128, 128>}, {pipeline_mode = #tpu.pipeline_mode<synchronous>, transform_indices = @transform_4, window_bounds = array<i64: 1, 128>}, {pipeline_mode = #tpu.pipeline_mode<synchronous>, transform_indices = @transform_5, window_bounds = array<i64: 1, 128>}, {pipeline_mode = #tpu.pipeline_mode<synchronous>, transform_indices = @transform_6, window_bounds = array<i64: 128, 512>}, {pipeline_mode = #tpu.pipeline_mode<synchronous>, transform_indices = @transform_7, window_bounds = array<i64: 1, 512>}, {pipeline_mode = #tpu.pipeline_mode<synchronous>, transform_indices = @transform_8, window_bounds = array<i64: 512, 128>}, {pipeline_mode = #tpu.pipeline_mode<synchronous>, transform_indices = @transform_9, window_bounds = array<i64: 1, 128>}, {transform_indices = @transform_10, window_bounds = array<i64: 16, 128>}]} {
    %c0 = arith.constant 0 : index
    %c0_0 = arith.constant 0 : index
    %0 = vector.load %arg1[%c0, %c0_0] : memref<16x128xf32, #tpu.memory_space<vmem>>, vector<16x128xf32>
    %1 = arith.truncf %0 : vector<16x128xf32> to vector<16x128xbf16>
    %c0_1 = arith.constant 0 : index
    %c0_2 = arith.constant 0 : index
    %2 = vector.load %arg3[%c0_1, %c0_2] : memref<128x384xbf16, #tpu.memory_space<vmem>>, vector<128x384xbf16>
    %cst = arith.constant dense<0.000000e+00> : vector<16x384xf32>
    %3 = tpu.matmul %1, %2, %cst {dimension_numbers = #tpu.dot_dimension_numbers<[1], [0], [0], [1], [0, 0, 1, 1], [], []>} : vector<16x128xbf16>, vector<128x384xbf16>, vector<16x384xf32> -> vector<16x384xf32>
    %4 = vector.extract_strided_slice %3 {offsets = [0, 0], sizes = [16, 128], strides = [1, 1]} : vector<16x384xf32> to vector<16x128xf32>
    %5 = vector.extract_strided_slice %3 {offsets = [0, 128], sizes = [16, 128], strides = [1, 1]} : vector<16x384xf32> to vector<16x128xf32>
    %6 = vector.extract_strided_slice %3 {offsets = [0, 256], sizes = [16, 128], strides = [1, 1]} : vector<16x384xf32> to vector<16x128xf32>
    %7 = vector.shape_cast %4 : vector<16x128xf32> to vector<1x16x4x32xf32>
    %8 = tpu.transpose %7, [0, 2, 1, 3] : vector<1x16x4x32xf32> -> vector<1x4x16x32xf32>
    %9 = vector.shape_cast %8 : vector<1x4x16x32xf32> to vector<4x16x32xf32>
    %10 = arith.truncf %9 : vector<4x16x32xf32> to vector<4x16x32xbf16>
    %11 = vector.shape_cast %5 : vector<16x128xf32> to vector<1x16x4x32xf32>
    %12 = tpu.transpose %11, [0, 2, 1, 3] : vector<1x16x4x32xf32> -> vector<1x4x16x32xf32>
    %13 = vector.shape_cast %12 : vector<1x4x16x32xf32> to vector<4x16x32xf32>
    %14 = arith.truncf %13 : vector<4x16x32xf32> to vector<4x16x32xbf16>
    %15 = vector.shape_cast %6 : vector<16x128xf32> to vector<1x16x4x32xf32>
    %16 = tpu.transpose %15, [0, 2, 1, 3] : vector<1x16x4x32xf32> -> vector<1x4x16x32xf32>
    %17 = vector.shape_cast %16 : vector<1x4x16x32xf32> to vector<4x16x32xf32>
    %18 = arith.truncf %17 : vector<4x16x32xf32> to vector<4x16x32xbf16>
    "tpu.trace_start"() <{level = 10 : i32, message = "gqd,gkd->gqk"}> : () -> ()
    %cst_3 = arith.constant dense<0.000000e+00> : vector<4x16x16xf32>
    %19 = tpu.matmul %10, %14, %cst_3 {dimension_numbers = #tpu.dot_dimension_numbers<[2], [2], [1], [1], [0, 0, 0, 1, 1, 1], [0], [0]>} : vector<4x16x32xbf16>, vector<4x16x32xbf16>, vector<4x16x16xf32> -> vector<4x16x16xf32>
    "tpu.trace_stop"() : () -> ()
    %20 = vector.shape_cast %19 : vector<4x16x16xf32> to vector<1x4x16x16xf32>
    %c0_4 = arith.constant 0 : index
    %c0_5 = arith.constant 0 : index
    %c0_6 = arith.constant 0 : index
    %21 = vector.load %arg2[%c0_4, %c0_5, %c0_6] : memref<1x16x1xf32, #tpu.memory_space<vmem>>, vector<1x16x1xf32>
    %22 = vector.shape_cast %21 : vector<1x16x1xf32> to vector<1x1x16x1xf32>
    %cst_7 = arith.constant 0.000000e+00 : f32
    %23 = vector.broadcast %cst_7 : f32 to vector<1x1x16x1xf32>
    %24 = arith.cmpf ogt, %22, %23 : vector<1x1x16x1xf32>
    %cst_8 = arith.constant -1.000000e+09 : f32
    %25 = vector.shape_cast %24 : vector<1x1x16x1xi1> to vector<1x1x16x1xi1>
    %26 = vector.broadcast %25 : vector<1x1x16x1xi1> to vector<1x4x16x16xi1>
    %27 = vector.broadcast %cst_8 : f32 to vector<1x4x16x16xf32>
    %28 = arith.select %26, %27, %20 : vector<1x4x16x16xi1>, vector<1x4x16x16xf32>
    %cst_9 = arith.constant dense<0xFF800000> : vector<1x4x16xf32>
    %29 = vector.multi_reduction <maximumf>, %28, %cst_9 [3] : vector<1x4x16x16xf32> to vector<1x4x16xf32>
    %30 = vector.shape_cast %29 : vector<1x4x16xf32> to vector<1x4x16x1xf32>
    %31 = vector.broadcast %30 : vector<1x4x16x1xf32> to vector<1x4x16x16xf32>
    %32 = arith.subf %28, %31 : vector<1x4x16x16xf32>
    %33 = math.exp %32 : vector<1x4x16x16xf32>
    %cst_10 = arith.constant dense<0.000000e+00> : vector<1x4x16xf32>
    %34 = vector.multi_reduction <add>, %33, %cst_10 [3] : vector<1x4x16x16xf32> to vector<1x4x16xf32>
    %35 = vector.shape_cast %34 : vector<1x4x16xf32> to vector<1x4x16x1xf32>
    %36 = tpu.reciprocal %35 {approx = true} : vector<1x4x16x1xf32> -> vector<1x4x16x1xf32>
    %37 = arith.mulf %35, %36 : vector<1x4x16x1xf32>
    %cst_11 = arith.constant 2.000000e+00 : f32
    %38 = vector.broadcast %cst_11 : f32 to vector<1x4x16x1xf32>
    %39 = arith.subf %38, %37 : vector<1x4x16x1xf32>
    %40 = arith.mulf %36, %39 : vector<1x4x16x1xf32>
    %41 = vector.broadcast %40 : vector<1x4x16x1xf32> to vector<1x4x16x16xf32>
    %42 = arith.mulf %33, %41 : vector<1x4x16x16xf32>
    %43 = vector.shape_cast %42 : vector<1x4x16x16xf32> to vector<4x16x16xf32>
    %44 = arith.truncf %43 : vector<4x16x16xf32> to vector<4x16x16xbf16>
    "tpu.trace_start"() <{level = 10 : i32, message = "gqk,gkd->gqd"}> : () -> ()
    %cst_12 = arith.constant dense<0.000000e+00> : vector<4x16x32xf32>
    %45 = tpu.matmul %44, %18, %cst_12 {dimension_numbers = #tpu.dot_dimension_numbers<[2], [1], [1], [2], [0, 0, 0, 1, 1, 2], [0], [0]>} : vector<4x16x16xbf16>, vector<4x16x32xbf16>, vector<4x16x32xf32> -> vector<4x16x32xf32>
    "tpu.trace_stop"() : () -> ()
    %46 = vector.shape_cast %45 : vector<4x16x32xf32> to vector<1x4x16x32xf32>
    %47 = tpu.transpose %46, [0, 2, 1, 3] : vector<1x4x16x32xf32> -> vector<1x16x4x32xf32>
    %48 = vector.shape_cast %47 : vector<1x16x4x32xf32> to vector<16x128xf32>
    %49 = arith.truncf %48 : vector<16x128xf32> to vector<16x128xbf16>
    %c0_13 = arith.constant 0 : index
    %c0_14 = arith.constant 0 : index
    %50 = vector.load %arg4[%c0_13, %c0_14] : memref<128x128xbf16, #tpu.memory_space<vmem>>, vector<128x128xbf16>
    %cst_15 = arith.constant dense<0.000000e+00> : vector<16x128xf32>
    %51 = tpu.matmul %49, %50, %cst_15 {dimension_numbers = #tpu.dot_dimension_numbers<[1], [0], [0], [1], [0, 0, 1, 1], [], []>} : vector<16x128xbf16>, vector<128x128xbf16>, vector<16x128xf32> -> vector<16x128xf32>
    %c0_16 = arith.constant 0 : index
    %c0_17 = arith.constant 0 : index
    %52 = vector.load %arg5[%c0_16, %c0_17] : memref<1x128xf32, #tpu.memory_space<vmem>>, vector<1x128xf32>
    %53 = vector.shape_cast %52 : vector<1x128xf32> to vector<128xf32>
    %c0_18 = arith.constant 0 : index
    %c0_19 = arith.constant 0 : index
    %54 = vector.load %arg6[%c0_18, %c0_19] : memref<1x128xf32, #tpu.memory_space<vmem>>, vector<1x128xf32>
    %55 = vector.shape_cast %54 : vector<1x128xf32> to vector<128xf32>
    %56 = arith.addf %0, %51 : vector<16x128xf32>
    %cst_20 = arith.constant dense<0.000000e+00> : vector<16xf32>
    %57 = vector.multi_reduction <add>, %56, %cst_20 [1] : vector<16x128xf32> to vector<16xf32>
    %58 = vector.shape_cast %57 : vector<16xf32> to vector<16x1xf32>
    %cst_21 = arith.constant 1.280000e+02 : f32
    %59 = vector.broadcast %cst_21 : f32 to vector<16x1xf32>
    %60 = arith.divf %58, %59 : vector<16x1xf32>
    %61 = vector.broadcast %60 : vector<16x1xf32> to vector<16x128xf32>
    %62 = arith.subf %56, %61 : vector<16x128xf32>
    %63 = arith.mulf %62, %62 : vector<16x128xf32>
    %cst_22 = arith.constant dense<0.000000e+00> : vector<16xf32>
    %64 = vector.multi_reduction <add>, %63, %cst_22 [1] : vector<16x128xf32> to vector<16xf32>
    %65 = vector.shape_cast %64 : vector<16xf32> to vector<16x1xf32>
    %cst_23 = arith.constant 1.280000e+02 : f32
    %66 = vector.broadcast %cst_23 : f32 to vector<16x1xf32>
    %67 = arith.divf %65, %66 : vector<16x1xf32>
    %68 = vector.broadcast %60 : vector<16x1xf32> to vector<16x128xf32>
    %69 = arith.subf %56, %68 : vector<16x128xf32>
    %cst_24 = arith.constant 9.99999974E-6 : f32
    %70 = vector.broadcast %cst_24 : f32 to vector<16x1xf32>
    %71 = arith.addf %67, %70 : vector<16x1xf32>
    %72 = math.rsqrt %71 : vector<16x1xf32>
    %73 = vector.broadcast %72 : vector<16x1xf32> to vector<16x128xf32>
    %74 = arith.mulf %69, %73 : vector<16x128xf32>
    %75 = vector.shape_cast %53 : vector<128xf32> to vector<1x128xf32>
    %76 = vector.broadcast %75 : vector<1x128xf32> to vector<16x128xf32>
    %77 = arith.mulf %74, %76 : vector<16x128xf32>
    %78 = vector.shape_cast %55 : vector<128xf32> to vector<1x128xf32>
    %79 = vector.broadcast %78 : vector<1x128xf32> to vector<16x128xf32>
    %80 = arith.addf %77, %79 : vector<16x128xf32>
    %81 = arith.truncf %80 : vector<16x128xf32> to vector<16x128xbf16>
    %c0_25 = arith.constant 0 : index
    %c0_26 = arith.constant 0 : index
    %82 = vector.load %arg7[%c0_25, %c0_26] : memref<128x512xbf16, #tpu.memory_space<vmem>>, vector<128x512xbf16>
    %cst_27 = arith.constant dense<0.000000e+00> : vector<16x512xf32>
    %83 = tpu.matmul %81, %82, %cst_27 {dimension_numbers = #tpu.dot_dimension_numbers<[1], [0], [0], [1], [0, 0, 1, 1], [], []>} : vector<16x128xbf16>, vector<128x512xbf16>, vector<16x512xf32> -> vector<16x512xf32>
    %c0_28 = arith.constant 0 : index
    %c0_29 = arith.constant 0 : index
    %84 = vector.load %arg8[%c0_28, %c0_29] : memref<1x512xf32, #tpu.memory_space<vmem>>, vector<1x512xf32>
    %85 = vector.shape_cast %84 : vector<1x512xf32> to vector<512xf32>
    %86 = vector.shape_cast %85 : vector<512xf32> to vector<1x512xf32>
    %87 = vector.broadcast %86 : vector<1x512xf32> to vector<16x512xf32>
    %88 = arith.addf %83, %87 : vector<16x512xf32>
    %cst_30 = arith.constant 0.000000e+00 : f32
    %89 = vector.broadcast %cst_30 : f32 to vector<16x512xf32>
    %90 = arith.maximumf %88, %89 : vector<16x512xf32>
    %91 = arith.truncf %90 : vector<16x512xf32> to vector<16x512xbf16>
    %c0_31 = arith.constant 0 : index
    %c0_32 = arith.constant 0 : index
    %92 = vector.load %arg9[%c0_31, %c0_32] : memref<512x128xbf16, #tpu.memory_space<vmem>>, vector<512x128xbf16>
    %cst_33 = arith.constant dense<0.000000e+00> : vector<16x128xf32>
    %93 = tpu.matmul %91, %92, %cst_33 {dimension_numbers = #tpu.dot_dimension_numbers<[1], [0], [0], [1], [0, 0, 1, 1], [], []>} : vector<16x512xbf16>, vector<512x128xbf16>, vector<16x128xf32> -> vector<16x128xf32>
    %c0_34 = arith.constant 0 : index
    %c0_35 = arith.constant 0 : index
    %94 = vector.load %arg10[%c0_34, %c0_35] : memref<1x128xf32, #tpu.memory_space<vmem>>, vector<1x128xf32>
    %95 = vector.shape_cast %94 : vector<1x128xf32> to vector<128xf32>
    %96 = vector.shape_cast %95 : vector<128xf32> to vector<1x128xf32>
    %97 = vector.broadcast %96 : vector<1x128xf32> to vector<16x128xf32>
    %98 = arith.addf %93, %97 : vector<16x128xf32>
    %99 = arith.addf %80, %98 : vector<16x128xf32>
    %cst_36 = arith.constant dense<0.000000e+00> : vector<16xf32>
    %100 = vector.multi_reduction <add>, %99, %cst_36 [1] : vector<16x128xf32> to vector<16xf32>
    %101 = vector.shape_cast %100 : vector<16xf32> to vector<16x1xf32>
    %cst_37 = arith.constant 1.280000e+02 : f32
    %102 = vector.broadcast %cst_37 : f32 to vector<16x1xf32>
    %103 = arith.divf %101, %102 : vector<16x1xf32>
    %104 = vector.broadcast %103 : vector<16x1xf32> to vector<16x128xf32>
    %105 = arith.subf %99, %104 : vector<16x128xf32>
    %106 = arith.mulf %105, %105 : vector<16x128xf32>
    %cst_38 = arith.constant dense<0.000000e+00> : vector<16xf32>
    %107 = vector.multi_reduction <add>, %106, %cst_38 [1] : vector<16x128xf32> to vector<16xf32>
    %108 = vector.shape_cast %107 : vector<16xf32> to vector<16x1xf32>
    %cst_39 = arith.constant 1.280000e+02 : f32
    %109 = vector.broadcast %cst_39 : f32 to vector<16x1xf32>
    %110 = arith.divf %108, %109 : vector<16x1xf32>
    %111 = vector.broadcast %103 : vector<16x1xf32> to vector<16x128xf32>
    %112 = arith.subf %99, %111 : vector<16x128xf32>
    %cst_40 = arith.constant 9.99999974E-6 : f32
    %113 = vector.broadcast %cst_40 : f32 to vector<16x1xf32>
    %114 = arith.addf %110, %113 : vector<16x1xf32>
    %115 = math.rsqrt %114 : vector<16x1xf32>
    %116 = vector.broadcast %115 : vector<16x1xf32> to vector<16x128xf32>
    %117 = arith.mulf %112, %116 : vector<16x128xf32>
    %118 = vector.shape_cast %53 : vector<128xf32> to vector<1x128xf32>
    %119 = vector.broadcast %118 : vector<1x128xf32> to vector<16x128xf32>
    %120 = arith.mulf %117, %119 : vector<16x128xf32>
    %121 = vector.shape_cast %55 : vector<128xf32> to vector<1x128xf32>
    %122 = vector.broadcast %121 : vector<1x128xf32> to vector<16x128xf32>
    %123 = arith.addf %120, %122 : vector<16x128xf32>
    %c0_41 = arith.constant 0 : index
    %c0_42 = arith.constant 0 : index
    %124 = vector.load %arg11[%c0_41, %c0_42] : memref<16x128xf32, #tpu.memory_space<vmem>>, vector<16x128xf32>
    tpu.vector_store %arg11[%c0_41, %c0_42], %123 {strides = array<i32>} : memref<16x128xf32, #tpu.memory_space<vmem>>, vector<16x128xf32>,
    return
  }
  func.func @transform_0(%arg0: i32) -> (i32, i32) {
    %c0_i32 = arith.constant 0 : i32
    %c0_i32_0 = arith.constant 0 : i32
    return %arg0, %c0_i32 : i32, i32
  }
  func.func @transform_1(%arg0: i32) -> (i32, i32, i32) {
    %c0_i32 = arith.constant 0 : i32
    %c0_i32_0 = arith.constant 0 : i32
    %c0_i32_1 = arith.constant 0 : i32
    return %arg0, %c0_i32, %c0_i32_0 : i32, i32, i32
  }
  func.func @transform_2(%arg0: i32) -> (i32, i32) {
    %c0_i32 = arith.constant 0 : i32
    %c0_i32_0 = arith.constant 0 : i32
    %c0_i32_1 = arith.constant 0 : i32
    return %c0_i32, %c0_i32_0 : i32, i32
  }
  func.func @transform_3(%arg0: i32) -> (i32, i32) {
    %c0_i32 = arith.constant 0 : i32
    %c0_i32_0 = arith.constant 0 : i32
    %c0_i32_1 = arith.constant 0 : i32
    return %c0_i32, %c0_i32_0 : i32, i32
  }
  func.func @transform_4(%arg0: i32) -> (i32, i32) {
    %c0_i32 = arith.constant 0 : i32
    %c0_i32_0 = arith.constant 0 : i32
    %c0_i32_1 = arith.constant 0 : i32
    return %c0_i32, %c0_i32_0 : i32, i32
  }
  func.func @transform_5(%arg0: i32) -> (i32, i32) {
    %c0_i32 = arith.constant 0 : i32
    %c0_i32_0 = arith.constant 0 : i32
    %c0_i32_1 = arith.constant 0 : i32
    return %c0_i32, %c0_i32_0 : i32, i32
  }
  func.func @transform_6(%arg0: i32) -> (i32, i32) {
    %c0_i32 = arith.constant 0 : i32
    %c0_i32_0 = arith.constant 0 : i32
    %c0_i32_1 = arith.constant 0 : i32
    return %c0_i32, %c0_i32_0 : i32, i32
  }
  func.func @transform_7(%arg0: i32) -> (i32, i32) {
    %c0_i32 = arith.constant 0 : i32
    %c0_i32_0 = arith.constant 0 : i32
    %c0_i32_1 = arith.constant 0 : i32
    return %c0_i32, %c0_i32_0 : i32, i32
  }
  func.func @transform_8(%arg0: i32) -> (i32, i32) {
    %c0_i32 = arith.constant 0 : i32
    %c0_i32_0 = arith.constant 0 : i32
    %c0_i32_1 = arith.constant 0 : i32
    return %c0_i32, %c0_i32_0 : i32, i32
  }
  func.func @transform_9(%arg0: i32) -> (i32, i32) {
    %c0_i32 = arith.constant 0 : i32
    %c0_i32_0 = arith.constant 0 : i32
    %c0_i32_1 = arith.constant 0 : i32
    return %c0_i32, %c0_i32_0 : i32, i32
  }
  func.func @transform_10(%arg0: i32) -> (i32, i32) {
    %c0_i32 = arith.constant 0 : i32
    %c0_i32_0 = arith.constant 0 : i32
    return %arg0, %c0_i32 : i32, i32
  }
}

</mosaic_0001>

<llo_original>
// kernel: transformer_encoder_layer.1
$region0: #{transformer_encoder_layer.1}
  #allocation0 [shape = 'u32[]', space=smem, size = 0x4, offset = 0x4, fixed_abs, tag = 'smem constant byte address 0x4 - core index']
  #allocation1 [shape = 'u32[144,128]{1,0:T(1,128)}', space=vmem, size = 0x12000, scoped, tag = 'internal scratch']
  %s0 = inlined_call_operand.vmem [shape: f32[32,128], index: 0, kind: input, shape index: {}]
  %s1 = inlined_call_operand.vmem [shape: f32[2,16,1], index: 1, kind: input, shape index: {}]
  %s2 = inlined_call_operand.vmem [shape: bf16[128,384], index: 2, kind: input, shape index: {}]
  %s3 = inlined_call_operand.vmem [shape: bf16[128,128], index: 3, kind: input, shape index: {}]
  %s4 = inlined_call_operand.vmem [shape: f32[1,128], index: 4, kind: input, shape index: {}]
  %s5 = inlined_call_operand.vmem [shape: f32[1,128], index: 5, kind: input, shape index: {}]
  %s6 = inlined_call_operand.vmem [shape: bf16[128,512], index: 6, kind: input, shape index: {}]
  %s7 = inlined_call_operand.vmem [shape: f32[1,512], index: 7, kind: input, shape index: {}]
  %s8 = inlined_call_operand.vmem [shape: bf16[512,128], index: 8, kind: input, shape index: {}]
  %s9 = inlined_call_operand.vmem [shape: f32[1,128], index: 9, kind: input, shape index: {}]
  %s10 = inlined_call_operand.hbm [shape: f32[32,128], index: 10, kind: output, shape index: {}]
  %s11 = sld [smem:[#allocation0]]
  $region73: #{transformer_encoder_layer.1} parent=0
    _
  %s13 = ssub.s32 1, %s11
  %s14 = scalar_select 0, %s13, %s11
  $region1: #{transformer_encoder_layer.1} parent=0
    #allocation2 [shape = 'u8[16384]{0}', space=vmem, size = 0x4000, scoped, tag = 'output window, operand 0']
    #allocation3 [shape = 's32[2]{0}', space=sflag, size = 0x8, scoped, tag = 'scoped memory for transformer_encoder_layer.1']
    %15 = vsyncpa [#allocation3], 0
    %s16 = scalar_lea.sflag [#allocation3], 1
    %17 = vsyncpa %s16, 0
    loop: start=0, step=1, limit=4
    $region2: #{transformer_encoder_layer.1} parent=1 // loop_pre_header
      _
    $region3: #{transformer_encoder_layer.1} parent=1 // loop_header
      %s19 = sphi 0, %s23
      %p20 = scmp.ge.s32.totalorder %s19, 4
      %s29 = sphi 0, %s31
      %s32 = sphi 0, %s29
      %s33 = sphi 0, %s32
      %s49 = sphi 0, %s33
      %s55 = sphi 0, %s57
      %s58 = sphi 0, %s55
      %s59 = sphi 0, %s58
      %s75 = sphi 0, %s59
      %s79 = sphi 0, %s79
      %s81 = sphi 0, %s79
      %s82 = sphi 0, %s81
      %s96 = sphi 0, %s82
      %s100 = sphi 0, %s100
      %s102 = sphi 0, %s100
      %s103 = sphi 0, %s102
      %s117 = sphi 0, %s103
      %s121 = sphi 0, %s121
      %s123 = sphi 0, %s121
      %s124 = sphi 0, %s123
      %s138 = sphi 0, %s124
      %s142 = sphi 0, %s142
      %s144 = sphi 0, %s142
      %s145 = sphi 0, %s144
      %s159 = sphi 0, %s145
      %s163 = sphi 0, %s163
      %s165 = sphi 0, %s163
      %s166 = sphi 0, %s165
      %s180 = sphi 0, %s166
      %s184 = sphi 0, %s184
      %s186 = sphi 0, %s184
      %s187 = sphi 0, %s186
      %s201 = sphi 0, %s187
      %s205 = sphi 0, %s205
      %s207 = sphi 0, %s205
      %s208 = sphi 0, %s207
      %s222 = sphi 0, %s208
      %s226 = sphi 0, %s226
      %s228 = sphi 0, %s226
      %s229 = sphi 0, %s228
      %s243 = sphi 0, %s229
      %s249 = sphi 0, %s251
      %s252 = sphi 0, %s249
      %s253 = sphi 0, %s252
      %s269 = sphi 0, %s253
    $region4: #{transformer_encoder_layer.1} parent=1 // loop_header_branch
      %22 = sbr.rel (%p20) target = $region8
    $region5: #{transformer_encoder_layer.1} parent=1 // loop_body
      %s24 = ssub.s32 %s19, 1
      %s25 = ssub.s32 %s19, 2
      %s26 = sadd.s32 %s19, 1
      %s27 = ssub.s32 %s19, %s26
      %p28 = scmp.eq.s32.totalorder %s27, 0
      %s30 = sadd.s32 %s29, 1
      %s31 = scalar_select %p28, %s29, %s30
      %p34 = pneg %p28
      %p35 = scmp.eq.s32.totalorder %s19, 1
      %p36 = por %p34, %p35
      %p37 = scmp.ne.s32.totalorder %s29, %s32
      %p38 = scmp.eq.s32.totalorder %s19, 0
      %p39 = por %p37, %p38
      %p40 = scmp.ne.s32.totalorder %s29, %s32
      %p41 = scmp.eq.s32.totalorder %s24, 1
      %p42 = por %p40, %p41
      %p43 = scmp.ne.s32.totalorder %s32, %s33
      %p44 = scmp.eq.s32.totalorder %s24, 0
      %p45 = por %p43, %p44
      %p46 = scmp.ne.s32.totalorder %s32, %s33
      %p47 = scmp.eq.s32.totalorder %s25, 1
      %p48 = por %p46, %p47
      %p50 = scmp.ne.s32.totalorder %s33, %s49
      %p51 = scmp.eq.s32.totalorder %s25, 0
      %p52 = por %p50, %p51
      %s53 = ssub.s32 %s19, %s26
      %p54 = scmp.eq.s32.totalorder %s53, 0
      %s56 = sadd.s32 %s55, 1
      %s57 = scalar_select %p54, %s55, %s56
      %p60 = pneg %p54
      %p61 = scmp.eq.s32.totalorder %s19, 1
      %p62 = por %p60, %p61
      %p63 = scmp.ne.s32.totalorder %s55, %s58
      %p64 = scmp.eq.s32.totalorder %s19, 0
      %p65 = por %p63, %p64
      %p66 = scmp.ne.s32.totalorder %s55, %s58
      %p67 = scmp.eq.s32.totalorder %s24, 1
      %p68 = por %p66, %p67
      %p69 = scmp.ne.s32.totalorder %s58, %s59
      %p70 = scmp.eq.s32.totalorder %s24, 0
      %p71 = por %p69, %p70
      %p72 = scmp.ne.s32.totalorder %s58, %s59
      %p73 = scmp.eq.s32.totalorder %s25, 1
      %p74 = por %p72, %p73
      %p76 = scmp.ne.s32.totalorder %s59, %s75
      %p77 = scmp.eq.s32.totalorder %s25, 0
      %p78 = por %p76, %p77
      %s80 = sadd.s32 %s79, 1
      %p83 = scmp.eq.s32.totalorder %s19, 1
      %p84 = scmp.ne.s32.totalorder %s79, %s81
      %p85 = scmp.eq.s32.totalorder %s19, 0
      %p86 = por %p84, %p85
      %p87 = scmp.ne.s32.totalorder %s79, %s81
      %p88 = scmp.eq.s32.totalorder %s24, 1
      %p89 = por %p87, %p88
      %p90 = scmp.ne.s32.totalorder %s81, %s82
      %p91 = scmp.eq.s32.totalorder %s24, 0
      %p92 = por %p90, %p91
      %p93 = scmp.ne.s32.totalorder %s81, %s82
      %p94 = scmp.eq.s32.totalorder %s25, 1
      %p95 = por %p93, %p94
      %p97 = scmp.ne.s32.totalorder %s82, %s96
      %p98 = scmp.eq.s32.totalorder %s25, 0
      %p99 = por %p97, %p98
      %s101 = sadd.s32 %s100, 1
      %p104 = scmp.eq.s32.totalorder %s19, 1
      %p105 = scmp.ne.s32.totalorder %s100, %s102
      %p106 = scmp.eq.s32.totalorder %s19, 0
      %p107 = por %p105, %p106
      %p108 = scmp.ne.s32.totalorder %s100, %s102
      %p109 = scmp.eq.s32.totalorder %s24, 1
      %p110 = por %p108, %p109
      %p111 = scmp.ne.s32.totalorder %s102, %s103
      %p112 = scmp.eq.s32.totalorder %s24, 0
      %p113 = por %p111, %p112
      %p114 = scmp.ne.s32.totalorder %s102, %s103
      %p115 = scmp.eq.s32.totalorder %s25, 1
      %p116 = por %p114, %p115
      %p118 = scmp.ne.s32.totalorder %s103, %s117
      %p119 = scmp.eq.s32.totalorder %s25, 0
      %p120 = por %p118, %p119
      %s122 = sadd.s32 %s121, 1
      %p125 = scmp.eq.s32.totalorder %s19, 1
      %p126 = scmp.ne.s32.totalorder %s121, %s123
      %p127 = scmp.eq.s32.totalorder %s19, 0
      %p128 = por %p126, %p127
      %p129 = scmp.ne.s32.totalorder %s121, %s123
      %p130 = scmp.eq.s32.totalorder %s24, 1
      %p131 = por %p129, %p130
      %p132 = scmp.ne.s32.totalorder %s123, %s124
      %p133 = scmp.eq.s32.totalorder %s24, 0
      %p134 = por %p132, %p133
      %p135 = scmp.ne.s32.totalorder %s123, %s124
      %p136 = scmp.eq.s32.totalorder %s25, 1
      %p137 = por %p135, %p136
      %p139 = scmp.ne.s32.totalorder %s124, %s138
      %p140 = scmp.eq.s32.totalorder %s25, 0
      %p141 = por %p139, %p140
      %s143 = sadd.s32 %s142, 1
      %p146 = scmp.eq.s32.totalorder %s19, 1
      %p147 = scmp.ne.s32.totalorder %s142, %s144
      %p148 = scmp.eq.s32.totalorder %s19, 0
      %p149 = por %p147, %p148
      %p150 = scmp.ne.s32.totalorder %s142, %s144
      %p151 = scmp.eq.s32.totalorder %s24, 1
      %p152 = por %p150, %p151
      %p153 = scmp.ne.s32.totalorder %s144, %s145
      %p154 = scmp.eq.s32.totalorder %s24, 0
      %p155 = por %p153, %p154
      %p156 = scmp.ne.s32.totalorder %s144, %s145
      %p157 = scmp.eq.s32.totalorder %s25, 1
      %p158 = por %p156, %p157
      %p160 = scmp.ne.s32.totalorder %s145, %s159
      %p161 = scmp.eq.s32.totalorder %s25, 0
      %p162 = por %p160, %p161
      %s164 = sadd.s32 %s163, 1
      %p167 = scmp.eq.s32.totalorder %s19, 1
      %p168 = scmp.ne.s32.totalorder %s163, %s165
      %p169 = scmp.eq.s32.totalorder %s19, 0
      %p170 = por %p168, %p169
      %p171 = scmp.ne.s32.totalorder %s163, %s165
      %p172 = scmp.eq.s32.totalorder %s24, 1
      %p173 = por %p171, %p172
      %p174 = scmp.ne.s32.totalorder %s165, %s166
      %p175 = scmp.eq.s32.totalorder %s24, 0
      %p176 = por %p174, %p175
      %p177 = scmp.ne.s32.totalorder %s165, %s166
      %p178 = scmp.eq.s32.totalorder %s25, 1
      %p179 = por %p177, %p178
      %p181 = scmp.ne.s32.totalorder %s166, %s180
      %p182 = scmp.eq.s32.totalorder %s25, 0
      %p183 = por %p181, %p182
      %s185 = sadd.s32 %s184, 1
      %p188 = scmp.eq.s32.totalorder %s19, 1
      %p189 = scmp.ne.s32.totalorder %s184, %s186
      %p190 = scmp.eq.s32.totalorder %s19, 0
      %p191 = por %p189, %p190
      %p192 = scmp.ne.s32.totalorder %s184, %s186
      %p193 = scmp.eq.s32.totalorder %s24, 1
      %p194 = por %p192, %p193
      %p195 = scmp.ne.s32.totalorder %s186, %s187
      %p196 = scmp.eq.s32.totalorder %s24, 0
      %p197 = por %p195, %p196
      %p198 = scmp.ne.s32.totalorder %s186, %s187
      %p199 = scmp.eq.s32.totalorder %s25, 1
      %p200 = por %p198, %p199
      %p202 = scmp.ne.s32.totalorder %s187, %s201
      %p203 = scmp.eq.s32.totalorder %s25, 0
      %p204 = por %p202, %p203
      %s206 = sadd.s32 %s205, 1
      %p209 = scmp.eq.s32.totalorder %s19, 1
      %p210 = scmp.ne.s32.totalorder %s205, %s207
      %p211 = scmp.eq.s32.totalorder %s19, 0
      %p212 = por %p210, %p211
      %p213 = scmp.ne.s32.totalorder %s205, %s207
      %p214 = scmp.eq.s32.totalorder %s24, 1
      %p215 = por %p213, %p214
      %p216 = scmp.ne.s32.totalorder %s207, %s208
      %p217 = scmp.eq.s32.totalorder %s24, 0
      %p218 = por %p216, %p217
      %p219 = scmp.ne.s32.totalorder %s207, %s208
      %p220 = scmp.eq.s32.totalorder %s25, 1
      %p221 = por %p219, %p220
      %p223 = scmp.ne.s32.totalorder %s208, %s222
      %p224 = scmp.eq.s32.totalorder %s25, 0
      %p225 = por %p223, %p224
      %s227 = sadd.s32 %s226, 1
      %p230 = scmp.eq.s32.totalorder %s19, 1
      %p231 = scmp.ne.s32.totalorder %s226, %s228
      %p232 = scmp.eq.s32.totalorder %s19, 0
      %p233 = por %p231, %p232
      %p234 = scmp.ne.s32.totalorder %s226, %s228
      %p235 = scmp.eq.s32.totalorder %s24, 1
      %p236 = por %p234, %p235
      %p237 = scmp.ne.s32.totalorder %s228, %s229
      %p238 = scmp.eq.s32.totalorder %s24, 0
      %p239 = por %p237, %p238
      %p240 = scmp.ne.s32.totalorder %s228, %s229
      %p241 = scmp.eq.s32.totalorder %s25, 1
      %p242 = por %p240, %p241
      %p244 = scmp.ne.s32.totalorder %s229, %s243
      %p245 = scmp.eq.s32.totalorder %s25, 0
      %p246 = por %p244, %p245
      %s247 = ssub.s32 %s19, %s26
      %p248 = scmp.eq.s32.totalorder %s247, 0
      %s250 = sadd.s32 %s249, 1
      %s251 = scalar_select %p248, %s249, %s250
      %p254 = pneg %p248
      %p255 = scmp.eq.s32.totalorder %s19, 1
      %p256 = por %p254, %p255
      %p257 = scmp.ne.s32.totalorder %s249, %s252
      %p258 = scmp.eq.s32.totalorder %s19, 0
      %p259 = por %p257, %p258
      %p260 = scmp.ne.s32.totalorder %s249, %s252
      %p261 = scmp.eq.s32.totalorder %s24, 1
      %p262 = por %p260, %p261
      %p263 = scmp.ne.s32.totalorder %s252, %s253
      %p264 = scmp.eq.s32.totalorder %s24, 0
      %p265 = por %p263, %p264
      %p266 = scmp.ne.s32.totalorder %s252, %s253
      %p267 = scmp.eq.s32.totalorder %s25, 1
      %p268 = por %p266, %p267
      %p270 = scmp.ne.s32.totalorder %s253, %s269
      %p271 = scmp.eq.s32.totalorder %s25, 0
      %p272 = por %p270, %p271
      %p273 = scmp.le.s32.totalorder 1, %s19
      %p274 = scmp.lt.s32.totalorder %s19, 3
      %p275 = pnand %p273, %p274
      %p276 = pneg %p275
      // Predicated region
      $region9: #{transformer_encoder_layer.1} parent=5 // pred_check
        _
      $region10: #{transformer_encoder_layer.1} parent=5 // pred_check_branch
        %278 = sbr.rel (%p275) target = $region12
      $region11: #{transformer_encoder_layer.1} parent=5 // pred_region
        %s279 = ssub.s32 %s19, 1
        // Predicated region
        $region13: #{transformer_encoder_layer.1} parent=11 // pred_check
          %p280 = pneg %p92
        $region14: #{transformer_encoder_layer.1} parent=11 // pred_check_branch
          %282 = sbr.rel (%p280) target = $region16
        $region15: #{transformer_encoder_layer.1} parent=11 // pred_region
          _
        $region16: #{transformer_encoder_layer.1} parent=11 // pred_fallthru
          _
        // Predicated region
        $region17: #{transformer_encoder_layer.1} parent=11 // pred_check
          %p283 = pneg %p113
        $region18: #{transformer_encoder_layer.1} parent=11 // pred_check_branch
          %285 = sbr.rel (%p283) target = $region20
        $region19: #{transformer_encoder_layer.1} parent=11 // pred_region
          _
        $region20: #{transformer_encoder_layer.1} parent=11 // pred_fallthru
          _
        // Predicated region
        $region21: #{transformer_encoder_layer.1} parent=11 // pred_check
          %p286 = pneg %p134
        $region22: #{transformer_encoder_layer.1} parent=11 // pred_check_branch
          %288 = sbr.rel (%p286) target = $region24
        $region23: #{transformer_encoder_layer.1} parent=11 // pred_region
          _
        $region24: #{transformer_encoder_layer.1} parent=11 // pred_fallthru
          _
        // Predicated region
        $region25: #{transformer_encoder_layer.1} parent=11 // pred_check
          %p289 = pneg %p155
        $region26: #{transformer_encoder_layer.1} parent=11 // pred_check_branch
          %291 = sbr.rel (%p289) target = $region28
        $region27: #{transformer_encoder_layer.1} parent=11 // pred_region
          _
        $region28: #{transformer_encoder_layer.1} parent=11 // pred_fallthru
          _
        // Predicated region
        $region29: #{transformer_encoder_layer.1} parent=11 // pred_check
          %p292 = pneg %p176
        $region30: #{transformer_encoder_layer.1} parent=11 // pred_check_branch
          %294 = sbr.rel (%p292) target = $region32
        $region31: #{transformer_encoder_layer.1} parent=11 // pred_region
          _
        $region32: #{transformer_encoder_layer.1} parent=11 // pred_fallthru
          _
        // Predicated region
        $region33: #{transformer_encoder_layer.1} parent=11 // pred_check
          %p295 = pneg %p197
        $region34: #{transformer_encoder_layer.1} parent=11 // pred_check_branch
          %297 = sbr.rel (%p295) target = $region36
        $region35: #{transformer_encoder_layer.1} parent=11 // pred_region
          _
        $region36: #{transformer_encoder_layer.1} parent=11 // pred_fallthru
          _
        // Predicated region
        $region37: #{transformer_encoder_layer.1} parent=11 // pred_check
          %p298 = pneg %p218
        $region38: #{transformer_encoder_layer.1} parent=11 // pred_check_branch
          %300 = sbr.rel (%p298) target = $region40
        $region39: #{transformer_encoder_layer.1} parent=11 // pred_region
          _
        $region40: #{transformer_encoder_layer.1} parent=11 // pred_fallthru
          _
        // Predicated region
        $region41: #{transformer_encoder_layer.1} parent=11 // pred_check
          %p301 = pneg %p239
        $region42: #{transformer_encoder_layer.1} parent=11 // pred_check_branch
          %303 = sbr.rel (%p301) target = $region44
        $region43: #{transformer_encoder_layer.1} parent=11 // pred_region
          _
        $region44: #{transformer_encoder_layer.1} parent=11 // pred_fallthru
          _
      $region12: #{transformer_encoder_layer.1} parent=5 // pred_fallthru
        _
      %p304 = scmp.lt.s32.totalorder %s19, 2
      // Predicated region
      $region45: #{transformer_encoder_layer.1} parent=5 // pred_check
        %p305 = pneg %p304
      $region46: #{transformer_encoder_layer.1} parent=5 // pred_check_branch
        %307 = sbr.rel (%p305) target = $region48
      $region47: #{transformer_encoder_layer.1} parent=5 // pred_region
        // Predicated region
        $region49: #{transformer_encoder_layer.1} parent=47 // pred_check
          %p308 = pneg %p39
        $region50: #{transformer_encoder_layer.1} parent=47 // pred_check_branch
          %310 = sbr.rel (%p308) target = $region52
        $region51: #{transformer_encoder_layer.1} parent=47 // pred_region
          %s311 = smul.u32 2, %s19
          %p312 = scmp.lt.s32.totalorder %s311, 3
          %s313 = scalar_select %p312, %s311, 3
          %s314 = smul.addr %s313, 8
          %s315 = scalar_lea.vmem %s0, %s314
          %s316 = smul.u32 2, %s19
        $region52: #{transformer_encoder_layer.1} parent=47 // pred_fallthru
          _
        // Predicated region
        $region53: #{transformer_encoder_layer.1} parent=47 // pred_check
          %p317 = pneg %p65
        $region54: #{transformer_encoder_layer.1} parent=47 // pred_check_branch
          %319 = sbr.rel (%p317) target = $region56
        $region55: #{transformer_encoder_layer.1} parent=47 // pred_region
          %p320 = scmp.lt.s32.totalorder %s19, 1
          %s321 = scalar_select %p320, %s19, 1
          %s322 = smul.addr %s321, 2
          %s323 = smul.addr %s322, 8
          %s324 = scalar_lea.vmem %s1, %s323
        $region56: #{transformer_encoder_layer.1} parent=47 // pred_fallthru
          _
      $region48: #{transformer_encoder_layer.1} parent=5 // pred_fallthru
        _
      %p325 = scmp.le.s32.totalorder 1, %s19
      %p326 = scmp.lt.s32.totalorder %s19, 3
      %p327 = pnand %p325, %p326
      %p328 = pneg %p327
      // Predicated region
      $region57: #{transformer_encoder_layer.1} parent=5 // pred_check
        _
      $region58: #{transformer_encoder_layer.1} parent=5 // pred_check_branch
        %330 = sbr.rel (%p327) target = $region60
      $region59: #{transformer_encoder_layer.1} parent=5 // pred_region
        %s331 = ssub.s32 %s19, 1
        %s332 = smul.u32 2, %s24
        %p333 = scmp.lt.s32.totalorder %s332, 3
        %s334 = scalar_select %p333, %s332, 3
        %s335 = smul.addr %s334, 8
        %s336 = scalar_lea.vmem %s0, %s335
        %p337 = pneg %p45
        %p338 = pneg %p42
        %p339 = scmp.lt.s32.totalorder %s24, 1
        %s340 = scalar_select %p339, %s24, 1
        %s341 = smul.addr %s340, 2
        %s342 = smul.addr %s341, 8
        %s343 = scalar_lea.vmem %s1, %s342
        %p344 = pneg %p71
        %p345 = pneg %p68
        %p346 = pneg %p92
        %p347 = pneg %p89
        %p348 = pneg %p113
        %p349 = pneg %p110
        %p350 = pneg %p134
        %p351 = pneg %p131
        %p352 = pneg %p155
        %p353 = pneg %p152
        %p354 = pneg %p176
        %p355 = pneg %p173
        %p356 = pneg %p197
        %p357 = pneg %p194
        %p358 = pneg %p218
        %p359 = pneg %p215
        %p360 = pneg %p239
        %p361 = pneg %p236
        %p362 = pneg %p265
        %p363 = pneg %p262
        %s364 = sand.u32 %s252, 1
        %s365 = scalar_lea.sflag [#allocation3], %s364
        %s366 = sand.u32 %s252, 1
        %s367 = smul.addr %s366, 16
        %s368 = scalar_lea.vmem [#allocation2], %s367
        %s369 = smul.u32 2, %s24
        %p370 = scmp.lt.s32.totalorder %s369, 3
        %s371 = scalar_select %p370, %s369, 3
        %s372 = smul.addr %s371, 8
        %s373 = scalar_lea.vmem %s0, %s372
        %s374 = smul.u32 2, %s24
        %p375 = scmp.lt.s32.totalorder %s24, 1
        %s376 = scalar_select %p375, %s24, 1
        %s377 = smul.addr %s376, 2
        %s378 = smul.addr %s377, 8
        %s379 = scalar_lea.vmem %s1, %s378
        %s380 = smul.u32 2, %s24
        %v382 = vld [vmem:[%s373] sm:$0xff]
        %v383 = vld [vmem:[%s373 + $0x8] sm:$0xff]
        %v384 = vpack.c.bf16 %v383, %v382
        %v385 = vld [vmem:[%s2] sm:$0xff]
        %v386 = vld [vmem:[%s2 + $0x8] sm:$0xf]
        %v387 = vld [vmem:[%s2 + $0xc] sm:$0xff]
        %v388 = vld [vmem:[%s2 + $0x14] sm:$0xf]
        %v389 = vld [vmem:[%s2 + $0x18] sm:$0xff]
        %v390 = vld [vmem:[%s2 + $0x20] sm:$0xf]
        %v391 = vld [vmem:[%s2 + $0x24] sm:$0xff]
        %v392 = vld [vmem:[%s2 + $0x2c] sm:$0xf]
        %v393 = vld [vmem:[%s2 + $0x30] sm:$0xff]
        %v394 = vld [vmem:[%s2 + $0x38] sm:$0xf]
        %v395 = vld [vmem:[%s2 + $0x3c] sm:$0xff]
        %v396 = vld [vmem:[%s2 + $0x44] sm:$0xf]
        %v397 = vld [vmem:[%s2 + $0x48] sm:$0xff]
        %v398 = vld [vmem:[%s2 + $0x50] sm:$0xf]
        %v399 = vld [vmem:[%s2 + $0x54] sm:$0xff]
        %v400 = vld [vmem:[%s2 + $0x5c] sm:$0xf]
        %v401 = vld [vmem:[%s2 + $0x60] sm:$0xff]
        %v402 = vld [vmem:[%s2 + $0x68] sm:$0xf]
        %v403 = vld [vmem:[%s2 + $0x6c] sm:$0xff]
        %v404 = vld [vmem:[%s2 + $0x74] sm:$0xf]
        %v405 = vld [vmem:[%s2 + $0x78] sm:$0xff]
        %v406 = vld [vmem:[%s2 + $0x80] sm:$0xf]
        %v407 = vld [vmem:[%s2 + $0x84] sm:$0xff]
        %v408 = vld [vmem:[%s2 + $0x8c] sm:$0xf]
        %v409 = vld [vmem:[%s2 + $0x90] sm:$0xff]
        %v410 = vld [vmem:[%s2 + $0x98] sm:$0xf]
        %v411 = vld [vmem:[%s2 + $0x9c] sm:$0xff]
        %v412 = vld [vmem:[%s2 + $0xa4] sm:$0xf]
        %v413 = vld [vmem:[%s2 + $0xa8] sm:$0xff]
        %v414 = vld [vmem:[%s2 + $0xb0] sm:$0xf]
        %v415 = vld [vmem:[%s2 + $0xb4] sm:$0xff]
        %v416 = vld [vmem:[%s2 + $0xbc] sm:$0xf]
        %v449 = vunpack.c.l.b16 %v385
        %v450 = vunpack.c.h.b16 %v385
        %v451 = vunpack.c.l.b16 %v386
        %v452 = vunpack.c.l.b16 %v387
        %v453 = vunpack.c.h.b16 %v387
        %v454 = vunpack.c.l.b16 %v388
        %v455 = vunpack.c.l.b16 %v389
        %v456 = vunpack.c.h.b16 %v389
        %v457 = vunpack.c.l.b16 %v390
        %v458 = vunpack.c.l.b16 %v391
        %v459 = vunpack.c.h.b16 %v391
        %v460 = vunpack.c.l.b16 %v392
        %v461 = vunpack.c.l.b16 %v393
        %v462 = vunpack.c.h.b16 %v393
        %v463 = vunpack.c.l.b16 %v394
        %v464 = vunpack.c.l.b16 %v395
        %v465 = vunpack.c.h.b16 %v395
        %v466 = vunpack.c.l.b16 %v396
        %v467 = vunpack.c.l.b16 %v397
        %v468 = vunpack.c.h.b16 %v397
        %v469 = vunpack.c.l.b16 %v398
        %v470 = vunpack.c.l.b16 %v399
        %v471 = vunpack.c.h.b16 %v399
        %v472 = vunpack.c.l.b16 %v400
        %v473 = vunpack.c.l.b16 %v401
        %v474 = vunpack.c.h.b16 %v401
        %v475 = vunpack.c.l.b16 %v402
        %v476 = vunpack.c.l.b16 %v403
        %v477 = vunpack.c.h.b16 %v403
        %v478 = vunpack.c.l.b16 %v404
        %v479 = vunpack.c.l.b16 %v405
        %v480 = vunpack.c.h.b16 %v405
        %v481 = vunpack.c.l.b16 %v406
        %v482 = vunpack.c.l.b16 %v407
        %v483 = vunpack.c.h.b16 %v407
        %v484 = vunpack.c.l.b16 %v408
        %v485 = vunpack.c.l.b16 %v409
        %v486 = vunpack.c.h.b16 %v409
        %v487 = vunpack.c.l.b16 %v410
        %v488 = vunpack.c.l.b16 %v411
        %v489 = vunpack.c.h.b16 %v411
        %v490 = vunpack.c.l.b16 %v412
        %v491 = vunpack.c.l.b16 %v413
        %v492 = vunpack.c.h.b16 %v413
        %v493 = vunpack.c.l.b16 %v414
        %v494 = vunpack.c.l.b16 %v415
        %v495 = vunpack.c.h.b16 %v415
        %v496 = vunpack.c.l.b16 %v416
        %v497 = vpack.c.b16 %v452, %v449
        %v498 = vpack.c.b16 %v453, %v450
        %v499 = vpack.c.b16 %v454, %v451
        %v500 = vpack.c.b16 %v458, %v455
        %v501 = vpack.c.b16 %v459, %v456
        %v502 = vpack.c.b16 %v460, %v457
        %v503 = vpack.c.b16 %v464, %v461
        %v504 = vpack.c.b16 %v465, %v462
        %v505 = vpack.c.b16 %v466, %v463
        %v506 = vpack.c.b16 %v470, %v467
        %v507 = vpack.c.b16 %v471, %v468
        %v508 = vpack.c.b16 %v472, %v469
        %v509 = vpack.c.b16 %v476, %v473
        %v510 = vpack.c.b16 %v477, %v474
        %v511 = vpack.c.b16 %v478, %v475
        %v512 = vpack.c.b16 %v482, %v479
        %v513 = vpack.c.b16 %v483, %v480
        %v514 = vpack.c.b16 %v484, %v481
        %v515 = vpack.c.b16 %v488, %v485
        %v516 = vpack.c.b16 %v489, %v486
        %v517 = vpack.c.b16 %v490, %v487
        %v518 = vpack.c.b16 %v494, %v491
        %v519 = vpack.c.b16 %v495, %v492
        %v520 = vpack.c.b16 %v496, %v493
        %545 = vmatprep.subr.bf16.mxu0 %v498
        %546 = vmatpush1.bf16.msra.mxu0 %v497
        %547 = vmatprep.subr.bf16.mxu0 %v501
        %548 = vmatpush1.bf16.msra.mxu0 %v500
        %549 = vmatprep.subr.bf16.mxu0 %v504
        %550 = vmatpush1.bf16.msra.mxu0 %v503
        %551 = vmatprep.subr.bf16.mxu0 %v507
        %552 = vmatpush1.bf16.msra.mxu0 %v506
        %553 = vmatprep.subr.bf16.mxu0 %v510
        %554 = vmatpush1.bf16.msra.mxu0 %v509
        %555 = vmatprep.subr.bf16.mxu0 %v513
        %556 = vmatpush1.bf16.msra.mxu0 %v512
        %557 = vmatprep.subr.bf16.mxu0 %v516
        %558 = vmatpush1.bf16.msra.mxu0 %v515
        %559 = vmatprep.subr.bf16.mxu0 %v519
        %560 = vmatpush1.bf16.msra.mxu0 %v518
        %561 = vmatprep.subr.bf16.mxu0 0
        %562 = vmatpush1.bf16.msra.mxu0 0
        %563 = vmatprep.subr.bf16.mxu0 0
        %564 = vmatpush1.bf16.msra.mxu0 0
        %565 = vmatprep.subr.bf16.mxu0 0
        %566 = vmatpush1.bf16.msra.mxu0 0
        %567 = vmatprep.subr.bf16.mxu0 0
        %568 = vmatpush1.bf16.msra.mxu0 0
        %569 = vmatprep.subr.bf16.mxu0 0
        %570 = vmatpush1.bf16.msra.mxu0 0
        %571 = vmatprep.subr.bf16.mxu0 0
        %572 = vmatpush1.bf16.msra.mxu0 0
        %573 = vmatprep.subr.bf16.mxu0 0
        %574 = vmatpush1.bf16.msra.mxu0 0
        %575 = vmatprep.subr.bf16.mxu0 0
        %576 = vmatpush1.bf16.msra.mxu0 0
        %577 = vmatprep.mubr.bf16.mxu0 0
        %578 = vmatmul.mubr.bf16.gmra.mrb[0].mxu0 %v384
        %v579 = vpop.f32.mrb[0].mxu0
        %v580 = vadd.f32 0.0, %v579
        %v581 = vpop.f32.mrb[0].mxu0
        %v582 = vadd.f32 0.0, %v581
        %v583 = vpop.f32.mrb[0].mxu0
        %v584 = vadd.f32 0.0, %v583
        %v585 = vpop.f32.mrb[0].mxu0
        %v586 = vadd.f32 0.0, %v585
        %587 = vdwg.mxu0
        %588 = vmatprep.subr.bf16.mxu0 0
        %589 = vmatpush1.bf16.msra.mxu0 %v499
        %590 = vmatprep.subr.bf16.mxu0 0
        %591 = vmatpush1.bf16.msra.mxu0 %v502
        %592 = vmatprep.subr.bf16.mxu0 0
        %593 = vmatpush1.bf16.msra.mxu0 %v505
        %594 = vmatprep.subr.bf16.mxu0 0
        %595 = vmatpush1.bf16.msra.mxu0 %v508
        %596 = vmatprep.subr.bf16.mxu0 0
        %597 = vmatpush1.bf16.msra.mxu0 %v511
        %598 = vmatprep.subr.bf16.mxu0 0
        %599 = vmatpush1.bf16.msra.mxu0 %v514
        %600 = vmatprep.subr.bf16.mxu0 0
        %601 = vmatpush1.bf16.msra.mxu0 %v517
        %602 = vmatprep.subr.bf16.mxu0 0
        %603 = vmatpush1.bf16.msra.mxu0 %v520
        %604 = vmatprep.subr.bf16.mxu0 0
        %605 = vmatpush1.bf16.msra.mxu0 0
        %606 = vmatprep.subr.bf16.mxu0 0
        %607 = vmatpush1.bf16.msra.mxu0 0
        %608 = vmatprep.subr.bf16.mxu0 0
        %609 = vmatpush1.bf16.msra.mxu0 0
        %610 = vmatprep.subr.bf16.mxu0 0
        %611 = vmatpush1.bf16.msra.mxu0 0
        %612 = vmatprep.subr.bf16.mxu0 0
        %613 = vmatpush1.bf16.msra.mxu0 0
        %614 = vmatprep.subr.bf16.mxu0 0
        %615 = vmatpush1.bf16.msra.mxu0 0
        %616 = vmatprep.subr.bf16.mxu0 0
        %617 = vmatpush1.bf16.msra.mxu0 0
        %618 = vmatprep.subr.bf16.mxu0 0
        %619 = vmatpush1.bf16.msra.mxu0 0
        %620 = vmatprep.mubr.bf16.mxu0 0
        %621 = vmatmul.mubr.bf16.gmra.mrb[0].mxu0 %v384
        %v622 = vpop.f32.mrb[0].mxu0
        %v623 = vadd.f32 0.0, %v622
        %v624 = vpop.f32.mrb[0].mxu0
        %v625 = vpop.f32.mrb[0].mxu0
        %v626 = vadd.f32 0.0, %v625
        %v627 = vpop.f32.mrb[0].mxu0
        %628 = vdwg.mxu0
        %631 = vrot.lane.b32.xlu0 %v580, 96
        %v632 = vpop.permute.xlu0 %631
        %633 = vrot.lane.b32.xlu0 %v584, 96
        %v634 = vpop.permute.xlu0 %633
        %637 = vrot.lane.b32.xlu0 %v580, 64
        %v638 = vpop.permute.xlu0 %637
        %639 = vrot.lane.b32.xlu0 %v584, 64
        %v640 = vpop.permute.xlu0 %639
        %643 = vrot.lane.b32.xlu0 %v580, 32
        %v644 = vpop.permute.xlu0 %643
        %645 = vrot.lane.b32.xlu0 %v584, 32
        %v646 = vpop.permute.xlu0 %645
        %v649 = vcombine.low %v580, %v638
        %v650 = vcombine.high %v580, %v638
        %v652 = vunpack.c.l.s4 1983009808
        %v653 = vunpack.c.0.s8 %v652
        %v654 = vlaneseq
        %v655 = vshrl.u32 %v654, 7
        %v656 = vsub.s32 %v653, %v655
        %v657 = vrot.slane %v649, %v656
        %v659 = vunpack.c.l.s4 1983009808
        %v660 = vunpack.c.0.s8 %v659
        %v661 = vlaneseq
        %v662 = vshrl.u32 %v661, 7
        %v663 = vsub.s32 %v660, %v662
        %v664 = vrot.slane %v650, %v663
        %v665 = vcombine.low %v632, %v644
        %v666 = vcombine.high %v632, %v644
        %v668 = vunpack.c.l.s4 1983009808
        %v669 = vunpack.c.0.s8 %v668
        %v670 = vlaneseq
        %v671 = vshrl.u32 %v670, 7
        %v672 = vsub.s32 %v669, %v671
        %v673 = vrot.slane %v665, %v672
        %v675 = vunpack.c.l.s4 1983009808
        %v676 = vunpack.c.0.s8 %v675
        %v677 = vlaneseq
        %v678 = vshrl.u32 %v677, 7
        %v679 = vsub.s32 %v676, %v678
        %v680 = vrot.slane %v666, %v679
        %v681 = vcombine.low %v657, %v673
        %v682 = vcombine.high %v657, %v673
        %v684 = vunpack.c.l.s4 1934713408
        %v685 = vunpack.c.0.s8 %v684
        %v686 = vlaneseq
        %v687 = vshrl.u32 %v686, 7
        %v688 = vsub.s32 %v685, %v687
        %v689 = vrot.slane %v681, %v688
        %v691 = vunpack.c.l.s4 1934713408
        %v692 = vunpack.c.0.s8 %v691
        %v693 = vlaneseq
        %v694 = vshrl.u32 %v693, 7
        %v695 = vsub.s32 %v692, %v694
        %v696 = vrot.slane %v682, %v695
        %v697 = vcombine.low %v664, %v680
        %v698 = vcombine.high %v664, %v680
        %v700 = vunpack.c.l.s4 1934713408
        %v701 = vunpack.c.0.s8 %v700
        %v702 = vlaneseq
        %v703 = vshrl.u32 %v702, 7
        %v704 = vsub.s32 %v701, %v703
        %v705 = vrot.slane %v697, %v704
        %v707 = vunpack.c.l.s4 1934713408
        %v708 = vunpack.c.0.s8 %v707
        %v709 = vlaneseq
        %v710 = vshrl.u32 %v709, 7
        %v711 = vsub.s32 %v708, %v710
        %v712 = vrot.slane %v698, %v711
        %v713 = vcombine.high %v689, 0.0
        %v714 = vcombine.high %v696, 0.0
        %v715 = vcombine.high %v705, 0.0
        %v716 = vcombine.high %v712, 0.0
        %v717 = vcombine.low %v584, %v640
        %v718 = vcombine.high %v584, %v640
        %v720 = vunpack.c.l.s4 1983009808
        %v721 = vunpack.c.0.s8 %v720
        %v722 = vlaneseq
        %v723 = vshrl.u32 %v722, 7
        %v724 = vsub.s32 %v721, %v723
        %v725 = vrot.slane %v717, %v724
        %v727 = vunpack.c.l.s4 1983009808
        %v728 = vunpack.c.0.s8 %v727
        %v729 = vlaneseq
        %v730 = vshrl.u32 %v729, 7
        %v731 = vsub.s32 %v728, %v730
        %v732 = vrot.slane %v718, %v731
        %v733 = vcombine.low %v634, %v646
        %v734 = vcombine.high %v634, %v646
        %v736 = vunpack.c.l.s4 1983009808
        %v737 = vunpack.c.0.s8 %v736
        %v738 = vlaneseq
        %v739 = vshrl.u32 %v738, 7
        %v740 = vsub.s32 %v737, %v739
        %v741 = vrot.slane %v733, %v740
        %v743 = vunpack.c.l.s4 1983009808
        %v744 = vunpack.c.0.s8 %v743
        %v745 = vlaneseq
        %v746 = vshrl.u32 %v745, 7
        %v747 = vsub.s32 %v744, %v746
        %v748 = vrot.slane %v734, %v747
        %v749 = vcombine.low %v725, %v741
        %v750 = vcombine.high %v725, %v741
        %v752 = vunpack.c.l.s4 1934713408
        %v753 = vunpack.c.0.s8 %v752
        %v754 = vlaneseq
        %v755 = vshrl.u32 %v754, 7
        %v756 = vsub.s32 %v753, %v755
        %v757 = vrot.slane %v749, %v756
        %v759 = vunpack.c.l.s4 1934713408
        %v760 = vunpack.c.0.s8 %v759
        %v761 = vlaneseq
        %v762 = vshrl.u32 %v761, 7
        %v763 = vsub.s32 %v760, %v762
        %v764 = vrot.slane %v750, %v763
        %v765 = vcombine.low %v732, %v748
        %v766 = vcombine.high %v732, %v748
        %v768 = vunpack.c.l.s4 1934713408
        %v769 = vunpack.c.0.s8 %v768
        %v770 = vlaneseq
        %v771 = vshrl.u32 %v770, 7
        %v772 = vsub.s32 %v769, %v771
        %v773 = vrot.slane %v765, %v772
        %v775 = vunpack.c.l.s4 1934713408
        %v776 = vunpack.c.0.s8 %v775
        %v777 = vlaneseq
        %v778 = vshrl.u32 %v777, 7
        %v779 = vsub.s32 %v776, %v778
        %v780 = vrot.slane %v766, %v779
        %v781 = vcombine.high %v757, 0.0
        %v782 = vcombine.high %v764, 0.0
        %v783 = vcombine.high %v773, 0.0
        %v784 = vcombine.high %v780, 0.0
        %v785 = vcombine.low %v689, %v696
        %v787 = vunpack.c.l.s4 1983009808
        %v788 = vunpack.c.0.s8 %v787
        %v789 = vlaneseq
        %v790 = vshrl.u32 %v789, 7
        %v791 = vsub.s32 %v788, %v790
        %v792 = vrot.slane %v785, %v791
        %v793 = vcombine.low %v713, %v714
        %v795 = vunpack.c.l.s4 1983009808
        %v796 = vunpack.c.0.s8 %v795
        %v797 = vlaneseq
        %v798 = vshrl.u32 %v797, 7
        %v799 = vsub.s32 %v796, %v798
        %v800 = vrot.slane %v793, %v799
        %v801 = vcombine.low %v705, %v712
        %v803 = vunpack.c.l.s4 1983009808
        %v804 = vunpack.c.0.s8 %v803
        %v805 = vlaneseq
        %v806 = vshrl.u32 %v805, 7
        %v807 = vsub.s32 %v804, %v806
        %v808 = vrot.slane %v801, %v807
        %v809 = vcombine.low %v715, %v716
        %v811 = vunpack.c.l.s4 1983009808
        %v812 = vunpack.c.0.s8 %v811
        %v813 = vlaneseq
        %v814 = vshrl.u32 %v813, 7
        %v815 = vsub.s32 %v812, %v814
        %v816 = vrot.slane %v809, %v815
        %v817 = vcombine.low %v792, %v800
        %v818 = vcombine.high %v792, %v800
        %v820 = vunpack.c.l.s4 1934713408
        %v821 = vunpack.c.0.s8 %v820
        %v822 = vlaneseq
        %v823 = vshrl.u32 %v822, 7
        %v824 = vsub.s32 %v821, %v823
        %v825 = vrot.slane %v817, %v824
        %v827 = vunpack.c.l.s4 1934713408
        %v828 = vunpack.c.0.s8 %v827
        %v829 = vlaneseq
        %v830 = vshrl.u32 %v829, 7
        %v831 = vsub.s32 %v828, %v830
        %v832 = vrot.slane %v818, %v831
        %v833 = vcombine.low %v808, %v816
        %v834 = vcombine.high %v808, %v816
        %v836 = vunpack.c.l.s4 1934713408
        %v837 = vunpack.c.0.s8 %v836
        %v838 = vlaneseq
        %v839 = vshrl.u32 %v838, 7
        %v840 = vsub.s32 %v837, %v839
        %v841 = vrot.slane %v833, %v840
        %v843 = vunpack.c.l.s4 1934713408
        %v844 = vunpack.c.0.s8 %v843
        %v845 = vlaneseq
        %v846 = vshrl.u32 %v845, 7
        %v847 = vsub.s32 %v844, %v846
        %v848 = vrot.slane %v834, %v847
        %v849 = vcombine.low %v825, %v841
        %v850 = vcombine.high %v825, %v841
        %v851 = vcombine.low %v832, %v848
        %v852 = vcombine.high %v832, %v848
        %v853 = vcombine.low %v757, %v764
        %v855 = vunpack.c.l.s4 1983009808
        %v856 = vunpack.c.0.s8 %v855
        %v857 = vlaneseq
        %v858 = vshrl.u32 %v857, 7
        %v859 = vsub.s32 %v856, %v858
        %v860 = vrot.slane %v853, %v859
        %v861 = vcombine.low %v781, %v782
        %v863 = vunpack.c.l.s4 1983009808
        %v864 = vunpack.c.0.s8 %v863
        %v865 = vlaneseq
        %v866 = vshrl.u32 %v865, 7
        %v867 = vsub.s32 %v864, %v866
        %v868 = vrot.slane %v861, %v867
        %v869 = vcombine.low %v773, %v780
        %v871 = vunpack.c.l.s4 1983009808
        %v872 = vunpack.c.0.s8 %v871
        %v873 = vlaneseq
        %v874 = vshrl.u32 %v873, 7
        %v875 = vsub.s32 %v872, %v874
        %v876 = vrot.slane %v869, %v875
        %v877 = vcombine.low %v783, %v784
        %v879 = vunpack.c.l.s4 1983009808
        %v880 = vunpack.c.0.s8 %v879
        %v881 = vlaneseq
        %v882 = vshrl.u32 %v881, 7
        %v883 = vsub.s32 %v880, %v882
        %v884 = vrot.slane %v877, %v883
        %v885 = vcombine.low %v860, %v868
        %v886 = vcombine.high %v860, %v868
        %v888 = vunpack.c.l.s4 1934713408
        %v889 = vunpack.c.0.s8 %v888
        %v890 = vlaneseq
        %v891 = vshrl.u32 %v890, 7
        %v892 = vsub.s32 %v889, %v891
        %v893 = vrot.slane %v885, %v892
        %v895 = vunpack.c.l.s4 1934713408
        %v896 = vunpack.c.0.s8 %v895
        %v897 = vlaneseq
        %v898 = vshrl.u32 %v897, 7
        %v899 = vsub.s32 %v896, %v898
        %v900 = vrot.slane %v886, %v899
        %v901 = vcombine.low %v876, %v884
        %v902 = vcombine.high %v876, %v884
        %v904 = vunpack.c.l.s4 1934713408
        %v905 = vunpack.c.0.s8 %v904
        %v906 = vlaneseq
        %v907 = vshrl.u32 %v906, 7
        %v908 = vsub.s32 %v905, %v907
        %v909 = vrot.slane %v901, %v908
        %v911 = vunpack.c.l.s4 1934713408
        %v912 = vunpack.c.0.s8 %v911
        %v913 = vlaneseq
        %v914 = vshrl.u32 %v913, 7
        %v915 = vsub.s32 %v912, %v914
        %v916 = vrot.slane %v902, %v915
        %v917 = vcombine.low %v893, %v909
        %v918 = vcombine.high %v893, %v909
        %v919 = vcombine.low %v900, %v916
        %v920 = vcombine.high %v900, %v916
        %v921 = vpack.c.bf16 %v917, %v849
        %v922 = vpack.c.bf16 %v918, %v850
        %v923 = vpack.c.bf16 %v919, %v851
        %v924 = vpack.c.bf16 %v920, %v852
        %927 = vrot.lane.b32.xlu0 %v582, 96
        %v928 = vpop.permute.xlu0 %927
        %929 = vrot.lane.b32.xlu0 %v586, 96
        %v930 = vpop.permute.xlu0 %929
        %933 = vrot.lane.b32.xlu0 %v582, 64
        %v934 = vpop.permute.xlu0 %933
        %935 = vrot.lane.b32.xlu0 %v586, 64
        %v936 = vpop.permute.xlu0 %935
        %939 = vrot.lane.b32.xlu0 %v582, 32
        %v940 = vpop.permute.xlu0 %939
        %941 = vrot.lane.b32.xlu0 %v586, 32
        %v942 = vpop.permute.xlu0 %941
        %v945 = vcombine.low %v582, %v934
        %v946 = vcombine.high %v582, %v934
        %v948 = vunpack.c.l.s4 1983009808
        %v949 = vunpack.c.0.s8 %v948
        %v950 = vlaneseq
        %v951 = vshrl.u32 %v950, 7
        %v952 = vsub.s32 %v949, %v951
        %v953 = vrot.slane %v945, %v952
        %v955 = vunpack.c.l.s4 1983009808
        %v956 = vunpack.c.0.s8 %v955
        %v957 = vlaneseq
        %v958 = vshrl.u32 %v957, 7
        %v959 = vsub.s32 %v956, %v958
        %v960 = vrot.slane %v946, %v959
        %v961 = vcombine.low %v928, %v940
        %v962 = vcombine.high %v928, %v940
        %v964 = vunpack.c.l.s4 1983009808
        %v965 = vunpack.c.0.s8 %v964
        %v966 = vlaneseq
        %v967 = vshrl.u32 %v966, 7
        %v968 = vsub.s32 %v965, %v967
        %v969 = vrot.slane %v961, %v968
        %v971 = vunpack.c.l.s4 1983009808
        %v972 = vunpack.c.0.s8 %v971
        %v973 = vlaneseq
        %v974 = vshrl.u32 %v973, 7
        %v975 = vsub.s32 %v972, %v974
        %v976 = vrot.slane %v962, %v975
        %v977 = vcombine.low %v953, %v969
        %v978 = vcombine.high %v953, %v969
        %v980 = vunpack.c.l.s4 1934713408
        %v981 = vunpack.c.0.s8 %v980
        %v982 = vlaneseq
        %v983 = vshrl.u32 %v982, 7
        %v984 = vsub.s32 %v981, %v983
        %v985 = vrot.slane %v977, %v984
        %v987 = vunpack.c.l.s4 1934713408
        %v988 = vunpack.c.0.s8 %v987
        %v989 = vlaneseq
        %v990 = vshrl.u32 %v989, 7
        %v991 = vsub.s32 %v988, %v990
        %v992 = vrot.slane %v978, %v991
        %v993 = vcombine.low %v960, %v976
        %v994 = vcombine.high %v960, %v976
        %v996 = vunpack.c.l.s4 1934713408
        %v997 = vunpack.c.0.s8 %v996
        %v998 = vlaneseq
        %v999 = vshrl.u32 %v998, 7
        %v1000 = vsub.s32 %v997, %v999
        %v1001 = vrot.slane %v993, %v1000
        %v1003 = vunpack.c.l.s4 1934713408
        %v1004 = vunpack.c.0.s8 %v1003
        %v1005 = vlaneseq
        %v1006 = vshrl.u32 %v1005, 7
        %v1007 = vsub.s32 %v1004, %v1006
        %v1008 = vrot.slane %v994, %v1007
        %v1009 = vcombine.high %v985, 0.0
        %v1010 = vcombine.high %v992, 0.0
        %v1011 = vcombine.high %v1001, 0.0
        %v1012 = vcombine.high %v1008, 0.0
        %v1013 = vcombine.low %v586, %v936
        %v1014 = vcombine.high %v586, %v936
        %v1016 = vunpack.c.l.s4 1983009808
        %v1017 = vunpack.c.0.s8 %v1016
        %v1018 = vlaneseq
        %v1019 = vshrl.u32 %v1018, 7
        %v1020 = vsub.s32 %v1017, %v1019
        %v1021 = vrot.slane %v1013, %v1020
        %v1023 = vunpack.c.l.s4 1983009808
        %v1024 = vunpack.c.0.s8 %v1023
        %v1025 = vlaneseq
        %v1026 = vshrl.u32 %v1025, 7
        %v1027 = vsub.s32 %v1024, %v1026
        %v1028 = vrot.slane %v1014, %v1027
        %v1029 = vcombine.low %v930, %v942
        %v1030 = vcombine.high %v930, %v942
        %v1032 = vunpack.c.l.s4 1983009808
        %v1033 = vunpack.c.0.s8 %v1032
        %v1034 = vlaneseq
        %v1035 = vshrl.u32 %v1034, 7
        %v1036 = vsub.s32 %v1033, %v1035
        %v1037 = vrot.slane %v1029, %v1036
        %v1039 = vunpack.c.l.s4 1983009808
        %v1040 = vunpack.c.0.s8 %v1039
        %v1041 = vlaneseq
        %v1042 = vshrl.u32 %v1041, 7
        %v1043 = vsub.s32 %v1040, %v1042
        %v1044 = vrot.slane %v1030, %v1043
        %v1045 = vcombine.low %v1021, %v1037
        %v1046 = vcombine.high %v1021, %v1037
        %v1048 = vunpack.c.l.s4 1934713408
        %v1049 = vunpack.c.0.s8 %v1048
        %v1050 = vlaneseq
        %v1051 = vshrl.u32 %v1050, 7
        %v1052 = vsub.s32 %v1049, %v1051
        %v1053 = vrot.slane %v1045, %v1052
        %v1055 = vunpack.c.l.s4 1934713408
        %v1056 = vunpack.c.0.s8 %v1055
        %v1057 = vlaneseq
        %v1058 = vshrl.u32 %v1057, 7
        %v1059 = vsub.s32 %v1056, %v1058
        %v1060 = vrot.slane %v1046, %v1059
        %v1061 = vcombine.low %v1028, %v1044
        %v1062 = vcombine.high %v1028, %v1044
        %v1064 = vunpack.c.l.s4 1934713408
        %v1065 = vunpack.c.0.s8 %v1064
        %v1066 = vlaneseq
        %v1067 = vshrl.u32 %v1066, 7
        %v1068 = vsub.s32 %v1065, %v1067
        %v1069 = vrot.slane %v1061, %v1068
        %v1071 = vunpack.c.l.s4 1934713408
        %v1072 = vunpack.c.0.s8 %v1071
        %v1073 = vlaneseq
        %v1074 = vshrl.u32 %v1073, 7
        %v1075 = vsub.s32 %v1072, %v1074
        %v1076 = vrot.slane %v1062, %v1075
        %v1077 = vcombine.high %v1053, 0.0
        %v1078 = vcombine.high %v1060, 0.0
        %v1079 = vcombine.high %v1069, 0.0
        %v1080 = vcombine.high %v1076, 0.0
        %v1081 = vcombine.low %v985, %v992
        %v1083 = vunpack.c.l.s4 1983009808
        %v1084 = vunpack.c.0.s8 %v1083
        %v1085 = vlaneseq
        %v1086 = vshrl.u32 %v1085, 7
        %v1087 = vsub.s32 %v1084, %v1086
        %v1088 = vrot.slane %v1081, %v1087
        %v1089 = vcombine.low %v1009, %v1010
        %v1091 = vunpack.c.l.s4 1983009808
        %v1092 = vunpack.c.0.s8 %v1091
        %v1093 = vlaneseq
        %v1094 = vshrl.u32 %v1093, 7
        %v1095 = vsub.s32 %v1092, %v1094
        %v1096 = vrot.slane %v1089, %v1095
        %v1097 = vcombine.low %v1001, %v1008
        %v1099 = vunpack.c.l.s4 1983009808
        %v1100 = vunpack.c.0.s8 %v1099
        %v1101 = vlaneseq
        %v1102 = vshrl.u32 %v1101, 7
        %v1103 = vsub.s32 %v1100, %v1102
        %v1104 = vrot.slane %v1097, %v1103
        %v1105 = vcombine.low %v1011, %v1012
        %v1107 = vunpack.c.l.s4 1983009808
        %v1108 = vunpack.c.0.s8 %v1107
        %v1109 = vlaneseq
        %v1110 = vshrl.u32 %v1109, 7
        %v1111 = vsub.s32 %v1108, %v1110
        %v1112 = vrot.slane %v1105, %v1111
        %v1113 = vcombine.low %v1088, %v1096
        %v1114 = vcombine.high %v1088, %v1096
        %v1116 = vunpack.c.l.s4 1934713408
        %v1117 = vunpack.c.0.s8 %v1116
        %v1118 = vlaneseq
        %v1119 = vshrl.u32 %v1118, 7
        %v1120 = vsub.s32 %v1117, %v1119
        %v1121 = vrot.slane %v1113, %v1120
        %v1123 = vunpack.c.l.s4 1934713408
        %v1124 = vunpack.c.0.s8 %v1123
        %v1125 = vlaneseq
        %v1126 = vshrl.u32 %v1125, 7
        %v1127 = vsub.s32 %v1124, %v1126
        %v1128 = vrot.slane %v1114, %v1127
        %v1129 = vcombine.low %v1104, %v1112
        %v1130 = vcombine.high %v1104, %v1112
        %v1132 = vunpack.c.l.s4 1934713408
        %v1133 = vunpack.c.0.s8 %v1132
        %v1134 = vlaneseq
        %v1135 = vshrl.u32 %v1134, 7
        %v1136 = vsub.s32 %v1133, %v1135
        %v1137 = vrot.slane %v1129, %v1136
        %v1139 = vunpack.c.l.s4 1934713408
        %v1140 = vunpack.c.0.s8 %v1139
        %v1141 = vlaneseq
        %v1142 = vshrl.u32 %v1141, 7
        %v1143 = vsub.s32 %v1140, %v1142
        %v1144 = vrot.slane %v1130, %v1143
        %v1145 = vcombine.low %v1121, %v1137
        %v1146 = vcombine.high %v1121, %v1137
        %v1147 = vcombine.low %v1128, %v1144
        %v1148 = vcombine.high %v1128, %v1144
        %v1149 = vcombine.low %v1053, %v1060
        %v1151 = vunpack.c.l.s4 1983009808
        %v1152 = vunpack.c.0.s8 %v1151
        %v1153 = vlaneseq
        %v1154 = vshrl.u32 %v1153, 7
        %v1155 = vsub.s32 %v1152, %v1154
        %v1156 = vrot.slane %v1149, %v1155
        %v1157 = vcombine.low %v1077, %v1078
        %v1159 = vunpack.c.l.s4 1983009808
        %v1160 = vunpack.c.0.s8 %v1159
        %v1161 = vlaneseq
        %v1162 = vshrl.u32 %v1161, 7
        %v1163 = vsub.s32 %v1160, %v1162
        %v1164 = vrot.slane %v1157, %v1163
        %v1165 = vcombine.low %v1069, %v1076
        %v1167 = vunpack.c.l.s4 1983009808
        %v1168 = vunpack.c.0.s8 %v1167
        %v1169 = vlaneseq
        %v1170 = vshrl.u32 %v1169, 7
        %v1171 = vsub.s32 %v1168, %v1170
        %v1172 = vrot.slane %v1165, %v1171
        %v1173 = vcombine.low %v1079, %v1080
        %v1175 = vunpack.c.l.s4 1983009808
        %v1176 = vunpack.c.0.s8 %v1175
        %v1177 = vlaneseq
        %v1178 = vshrl.u32 %v1177, 7
        %v1179 = vsub.s32 %v1176, %v1178
        %v1180 = vrot.slane %v1173, %v1179
        %v1181 = vcombine.low %v1156, %v1164
        %v1182 = vcombine.high %v1156, %v1164
        %v1184 = vunpack.c.l.s4 1934713408
        %v1185 = vunpack.c.0.s8 %v1184
        %v1186 = vlaneseq
        %v1187 = vshrl.u32 %v1186, 7
        %v1188 = vsub.s32 %v1185, %v1187
        %v1189 = vrot.slane %v1181, %v1188
        %v1191 = vunpack.c.l.s4 1934713408
        %v1192 = vunpack.c.0.s8 %v1191
        %v1193 = vlaneseq
        %v1194 = vshrl.u32 %v1193, 7
        %v1195 = vsub.s32 %v1192, %v1194
        %v1196 = vrot.slane %v1182, %v1195
        %v1197 = vcombine.low %v1172, %v1180
        %v1198 = vcombine.high %v1172, %v1180
        %v1200 = vunpack.c.l.s4 1934713408
        %v1201 = vunpack.c.0.s8 %v1200
        %v1202 = vlaneseq
        %v1203 = vshrl.u32 %v1202, 7
        %v1204 = vsub.s32 %v1201, %v1203
        %v1205 = vrot.slane %v1197, %v1204
        %v1207 = vunpack.c.l.s4 1934713408
        %v1208 = vunpack.c.0.s8 %v1207
        %v1209 = vlaneseq
        %v1210 = vshrl.u32 %v1209, 7
        %v1211 = vsub.s32 %v1208, %v1210
        %v1212 = vrot.slane %v1198, %v1211
        %v1213 = vcombine.low %v1189, %v1205
        %v1214 = vcombine.high %v1189, %v1205
        %v1215 = vcombine.low %v1196, %v1212
        %v1216 = vcombine.high %v1196, %v1212
        %v1217 = vpack.c.bf16 %v1213, %v1145
        %v1218 = vpack.c.bf16 %v1214, %v1146
        %v1219 = vpack.c.bf16 %v1215, %v1147
        %v1220 = vpack.c.bf16 %v1216, %v1148
        %1223 = vrot.lane.b32.xlu0 %v623, 96
        %v1224 = vpop.permute.xlu0 %1223
        %1225 = vrot.lane.b32.xlu0 %v626, 96
        %v1226 = vpop.permute.xlu0 %1225
        %1229 = vrot.lane.b32.xlu0 %v623, 64
        %v1230 = vpop.permute.xlu0 %1229
        %1231 = vrot.lane.b32.xlu0 %v626, 64
        %v1232 = vpop.permute.xlu0 %1231
        %1235 = vrot.lane.b32.xlu0 %v623, 32
        %v1236 = vpop.permute.xlu0 %1235
        %1237 = vrot.lane.b32.xlu0 %v626, 32
        %v1238 = vpop.permute.xlu0 %1237
        %v1241 = vcombine.low %v623, %v1230
        %v1242 = vcombine.high %v623, %v1230
        %v1244 = vunpack.c.l.s4 1983009808
        %v1245 = vunpack.c.0.s8 %v1244
        %v1246 = vlaneseq
        %v1247 = vshrl.u32 %v1246, 7
        %v1248 = vsub.s32 %v1245, %v1247
        %v1249 = vrot.slane %v1241, %v1248
        %v1251 = vunpack.c.l.s4 1983009808
        %v1252 = vunpack.c.0.s8 %v1251
        %v1253 = vlaneseq
        %v1254 = vshrl.u32 %v1253, 7
        %v1255 = vsub.s32 %v1252, %v1254
        %v1256 = vrot.slane %v1242, %v1255
        %v1257 = vcombine.low %v1224, %v1236
        %v1258 = vcombine.high %v1224, %v1236
        %v1260 = vunpack.c.l.s4 1983009808
        %v1261 = vunpack.c.0.s8 %v1260
        %v1262 = vlaneseq
        %v1263 = vshrl.u32 %v1262, 7
        %v1264 = vsub.s32 %v1261, %v1263
        %v1265 = vrot.slane %v1257, %v1264
        %v1267 = vunpack.c.l.s4 1983009808
        %v1268 = vunpack.c.0.s8 %v1267
        %v1269 = vlaneseq
        %v1270 = vshrl.u32 %v1269, 7
        %v1271 = vsub.s32 %v1268, %v1270
        %v1272 = vrot.slane %v1258, %v1271
        %v1273 = vcombine.low %v1249, %v1265
        %v1274 = vcombine.high %v1249, %v1265
        %v1276 = vunpack.c.l.s4 1934713408
        %v1277 = vunpack.c.0.s8 %v1276
        %v1278 = vlaneseq
        %v1279 = vshrl.u32 %v1278, 7
        %v1280 = vsub.s32 %v1277, %v1279
        %v1281 = vrot.slane %v1273, %v1280
        %v1283 = vunpack.c.l.s4 1934713408
        %v1284 = vunpack.c.0.s8 %v1283
        %v1285 = vlaneseq
        %v1286 = vshrl.u32 %v1285, 7
        %v1287 = vsub.s32 %v1284, %v1286
        %v1288 = vrot.slane %v1274, %v1287
        %v1289 = vcombine.low %v1256, %v1272
        %v1290 = vcombine.high %v1256, %v1272
        %v1292 = vunpack.c.l.s4 1934713408
        %v1293 = vunpack.c.0.s8 %v1292
        %v1294 = vlaneseq
        %v1295 = vshrl.u32 %v1294, 7
        %v1296 = vsub.s32 %v1293, %v1295
        %v1297 = vrot.slane %v1289, %v1296
        %v1299 = vunpack.c.l.s4 1934713408
        %v1300 = vunpack.c.0.s8 %v1299
        %v1301 = vlaneseq
        %v1302 = vshrl.u32 %v1301, 7
        %v1303 = vsub.s32 %v1300, %v1302
        %v1304 = vrot.slane %v1290, %v1303
        %v1305 = vcombine.high %v1281, 0.0
        %v1306 = vcombine.high %v1288, 0.0
        %v1307 = vcombine.high %v1297, 0.0
        %v1308 = vcombine.high %v1304, 0.0
        %v1309 = vcombine.low %v626, %v1232
        %v1310 = vcombine.high %v626, %v1232
        %v1312 = vunpack.c.l.s4 1983009808
        %v1313 = vunpack.c.0.s8 %v1312
        %v1314 = vlaneseq
        %v1315 = vshrl.u32 %v1314, 7
        %v1316 = vsub.s32 %v1313, %v1315
        %v1317 = vrot.slane %v1309, %v1316
        %v1319 = vunpack.c.l.s4 1983009808
        %v1320 = vunpack.c.0.s8 %v1319
        %v1321 = vlaneseq
        %v1322 = vshrl.u32 %v1321, 7
        %v1323 = vsub.s32 %v1320, %v1322
        %v1324 = vrot.slane %v1310, %v1323
        %v1325 = vcombine.low %v1226, %v1238
        %v1326 = vcombine.high %v1226, %v1238
        %v1328 = vunpack.c.l.s4 1983009808
        %v1329 = vunpack.c.0.s8 %v1328
        %v1330 = vlaneseq
        %v1331 = vshrl.u32 %v1330, 7
        %v1332 = vsub.s32 %v1329, %v1331
        %v1333 = vrot.slane %v1325, %v1332
        %v1335 = vunpack.c.l.s4 1983009808
        %v1336 = vunpack.c.0.s8 %v1335
        %v1337 = vlaneseq
        %v1338 = vshrl.u32 %v1337, 7
        %v1339 = vsub.s32 %v1336, %v1338
        %v1340 = vrot.slane %v1326, %v1339
        %v1341 = vcombine.low %v1317, %v1333
        %v1342 = vcombine.high %v1317, %v1333
        %v1344 = vunpack.c.l.s4 1934713408
        %v1345 = vunpack.c.0.s8 %v1344
        %v1346 = vlaneseq
        %v1347 = vshrl.u32 %v1346, 7
        %v1348 = vsub.s32 %v1345, %v1347
        %v1349 = vrot.slane %v1341, %v1348
        %v1351 = vunpack.c.l.s4 1934713408
        %v1352 = vunpack.c.0.s8 %v1351
        %v1353 = vlaneseq
        %v1354 = vshrl.u32 %v1353, 7
        %v1355 = vsub.s32 %v1352, %v1354
        %v1356 = vrot.slane %v1342, %v1355
        %v1357 = vcombine.low %v1324, %v1340
        %v1358 = vcombine.high %v1324, %v1340
        %v1360 = vunpack.c.l.s4 1934713408
        %v1361 = vunpack.c.0.s8 %v1360
        %v1362 = vlaneseq
        %v1363 = vshrl.u32 %v1362, 7
        %v1364 = vsub.s32 %v1361, %v1363
        %v1365 = vrot.slane %v1357, %v1364
        %v1367 = vunpack.c.l.s4 1934713408
        %v1368 = vunpack.c.0.s8 %v1367
        %v1369 = vlaneseq
        %v1370 = vshrl.u32 %v1369, 7
        %v1371 = vsub.s32 %v1368, %v1370
        %v1372 = vrot.slane %v1358, %v1371
        %v1373 = vcombine.high %v1349, 0.0
        %v1374 = vcombine.high %v1356, 0.0
        %v1375 = vcombine.high %v1365, 0.0
        %v1376 = vcombine.high %v1372, 0.0
        %v1377 = vcombine.low %v1281, %v1288
        %v1379 = vunpack.c.l.s4 1983009808
        %v1380 = vunpack.c.0.s8 %v1379
        %v1381 = vlaneseq
        %v1382 = vshrl.u32 %v1381, 7
        %v1383 = vsub.s32 %v1380, %v1382
        %v1384 = vrot.slane %v1377, %v1383
        %v1385 = vcombine.low %v1305, %v1306
        %v1387 = vunpack.c.l.s4 1983009808
        %v1388 = vunpack.c.0.s8 %v1387
        %v1389 = vlaneseq
        %v1390 = vshrl.u32 %v1389, 7
        %v1391 = vsub.s32 %v1388, %v1390
        %v1392 = vrot.slane %v1385, %v1391
        %v1393 = vcombine.low %v1297, %v1304
        %v1395 = vunpack.c.l.s4 1983009808
        %v1396 = vunpack.c.0.s8 %v1395
        %v1397 = vlaneseq
        %v1398 = vshrl.u32 %v1397, 7
        %v1399 = vsub.s32 %v1396, %v1398
        %v1400 = vrot.slane %v1393, %v1399
        %v1401 = vcombine.low %v1307, %v1308
        %v1403 = vunpack.c.l.s4 1983009808
        %v1404 = vunpack.c.0.s8 %v1403
        %v1405 = vlaneseq
        %v1406 = vshrl.u32 %v1405, 7
        %v1407 = vsub.s32 %v1404, %v1406
        %v1408 = vrot.slane %v1401, %v1407
        %v1409 = vcombine.low %v1384, %v1392
        %v1410 = vcombine.high %v1384, %v1392
        %v1412 = vunpack.c.l.s4 1934713408
        %v1413 = vunpack.c.0.s8 %v1412
        %v1414 = vlaneseq
        %v1415 = vshrl.u32 %v1414, 7
        %v1416 = vsub.s32 %v1413, %v1415
        %v1417 = vrot.slane %v1409, %v1416
        %v1419 = vunpack.c.l.s4 1934713408
        %v1420 = vunpack.c.0.s8 %v1419
        %v1421 = vlaneseq
        %v1422 = vshrl.u32 %v1421, 7
        %v1423 = vsub.s32 %v1420, %v1422
        %v1424 = vrot.slane %v1410, %v1423
        %v1425 = vcombine.low %v1400, %v1408
        %v1426 = vcombine.high %v1400, %v1408
        %v1428 = vunpack.c.l.s4 1934713408
        %v1429 = vunpack.c.0.s8 %v1428
        %v1430 = vlaneseq
        %v1431 = vshrl.u32 %v1430, 7
        %v1432 = vsub.s32 %v1429, %v1431
        %v1433 = vrot.slane %v1425, %v1432
        %v1435 = vunpack.c.l.s4 1934713408
        %v1436 = vunpack.c.0.s8 %v1435
        %v1437 = vlaneseq
        %v1438 = vshrl.u32 %v1437, 7
        %v1439 = vsub.s32 %v1436, %v1438
        %v1440 = vrot.slane %v1426, %v1439
        %v1441 = vcombine.low %v1417, %v1433
        %v1442 = vcombine.high %v1417, %v1433
        %v1443 = vcombine.low %v1424, %v1440
        %v1444 = vcombine.high %v1424, %v1440
        %v1445 = vcombine.low %v1349, %v1356
        %v1447 = vunpack.c.l.s4 1983009808
        %v1448 = vunpack.c.0.s8 %v1447
        %v1449 = vlaneseq
        %v1450 = vshrl.u32 %v1449, 7
        %v1451 = vsub.s32 %v1448, %v1450
        %v1452 = vrot.slane %v1445, %v1451
        %v1453 = vcombine.low %v1373, %v1374
        %v1455 = vunpack.c.l.s4 1983009808
        %v1456 = vunpack.c.0.s8 %v1455
        %v1457 = vlaneseq
        %v1458 = vshrl.u32 %v1457, 7
        %v1459 = vsub.s32 %v1456, %v1458
        %v1460 = vrot.slane %v1453, %v1459
        %v1461 = vcombine.low %v1365, %v1372
        %v1463 = vunpack.c.l.s4 1983009808
        %v1464 = vunpack.c.0.s8 %v1463
        %v1465 = vlaneseq
        %v1466 = vshrl.u32 %v1465, 7
        %v1467 = vsub.s32 %v1464, %v1466
        %v1468 = vrot.slane %v1461, %v1467
        %v1469 = vcombine.low %v1375, %v1376
        %v1471 = vunpack.c.l.s4 1983009808
        %v1472 = vunpack.c.0.s8 %v1471
        %v1473 = vlaneseq
        %v1474 = vshrl.u32 %v1473, 7
        %v1475 = vsub.s32 %v1472, %v1474
        %v1476 = vrot.slane %v1469, %v1475
        %v1477 = vcombine.low %v1452, %v1460
        %v1478 = vcombine.high %v1452, %v1460
        %v1480 = vunpack.c.l.s4 1934713408
        %v1481 = vunpack.c.0.s8 %v1480
        %v1482 = vlaneseq
        %v1483 = vshrl.u32 %v1482, 7
        %v1484 = vsub.s32 %v1481, %v1483
        %v1485 = vrot.slane %v1477, %v1484
        %v1487 = vunpack.c.l.s4 1934713408
        %v1488 = vunpack.c.0.s8 %v1487
        %v1489 = vlaneseq
        %v1490 = vshrl.u32 %v1489, 7
        %v1491 = vsub.s32 %v1488, %v1490
        %v1492 = vrot.slane %v1478, %v1491
        %v1493 = vcombine.low %v1468, %v1476
        %v1494 = vcombine.high %v1468, %v1476
        %v1496 = vunpack.c.l.s4 1934713408
        %v1497 = vunpack.c.0.s8 %v1496
        %v1498 = vlaneseq
        %v1499 = vshrl.u32 %v1498, 7
        %v1500 = vsub.s32 %v1497, %v1499
        %v1501 = vrot.slane %v1493, %v1500
        %v1503 = vunpack.c.l.s4 1934713408
        %v1504 = vunpack.c.0.s8 %v1503
        %v1505 = vlaneseq
        %v1506 = vshrl.u32 %v1505, 7
        %v1507 = vsub.s32 %v1504, %v1506
        %v1508 = vrot.slane %v1494, %v1507
        %v1509 = vcombine.low %v1485, %v1501
        %v1510 = vcombine.high %v1485, %v1501
        %v1511 = vcombine.low %v1492, %v1508
        %v1512 = vcombine.high %v1492, %v1508
        %v1513 = vpack.c.bf16 %v1509, %v1441
        %v1514 = vpack.c.bf16 %v1510, %v1442
        %v1515 = vpack.c.bf16 %v1511, %v1443
        %v1516 = vpack.c.bf16 %v1512, %v1444
        %vm1517 = vcmask 261120
        %v1519 = vsel %vm1517, %v921, 0
        %v1522 = vsel %vm1517, %v1217, 0
        %1524 = vmatprep.subr.bf16.mxu0 0
        %1525 = vmatpush1.bf16.xpose.msra.mxu0 %v1522
        %1526 = vmatprep.subr.bf16.mxu0 0
        %1527 = vmatpush1.bf16.xpose.msra.mxu0 0
        %1528 = vmatprep.subr.bf16.mxu0 0
        %1529 = vmatpush1.bf16.xpose.msra.mxu0 0
        %1530 = vmatprep.subr.bf16.mxu0 0
        %1531 = vmatpush1.bf16.xpose.msra.mxu0 0
        %1532 = vmatprep.subr.bf16.mxu0 0
        %1533 = vmatpush1.bf16.xpose.msra.mxu0 0
        %1534 = vmatprep.subr.bf16.mxu0 0
        %1535 = vmatpush1.bf16.xpose.msra.mxu0 0
        %1536 = vmatprep.subr.bf16.mxu0 0
        %1537 = vmatpush1.bf16.xpose.msra.mxu0 0
        %1538 = vmatprep.subr.bf16.mxu0 0
        %1539 = vmatpush1.bf16.xpose.msra.mxu0 0
        %1540 = vmatprep.subr.bf16.mxu0 0
        %1541 = vmatpush1.bf16.xpose.msra.mxu0 0
        %1542 = vmatprep.subr.bf16.mxu0 0
        %1543 = vmatpush1.bf16.xpose.msra.mxu0 0
        %1544 = vmatprep.subr.bf16.mxu0 0
        %1545 = vmatpush1.bf16.xpose.msra.mxu0 0
        %1546 = vmatprep.subr.bf16.mxu0 0
        %1547 = vmatpush1.bf16.xpose.msra.mxu0 0
        %1548 = vmatprep.subr.bf16.mxu0 0
        %1549 = vmatpush1.bf16.xpose.msra.mxu0 0
        %1550 = vmatprep.subr.bf16.mxu0 0
        %1551 = vmatpush1.bf16.xpose.msra.mxu0 0
        %1552 = vmatprep.subr.bf16.mxu0 0
        %1553 = vmatpush1.bf16.xpose.msra.mxu0 0
        %1554 = vmatprep.subr.bf16.mxu0 0
        %1555 = vmatpush1.bf16.xpose.msra.mxu0 0
        %1556 = vmatprep.mubr.bf16.mxu0 0
        %1557 = vmatmul.mubr.bf16.gmra.mrb[0].mxu0 %v1519
        %v1558 = vpop.f32.mrb[0].mxu0
        %v1559 = vadd.f32 0.0, %v1558
        %v1560 = vpop.f32.mrb[0].mxu0
        %v1561 = vpop.f32.mrb[0].mxu0
        %v1562 = vadd.f32 0.0, %v1561
        %v1563 = vpop.f32.mrb[0].mxu0
        %1564 = vdwg.mxu0
        %v1566 = vsel %vm1517, %v922, 0
        %v1569 = vsel %vm1517, %v1218, 0
        %1571 = vmatprep.subr.bf16.mxu0 0
        %1572 = vmatpush1.bf16.xpose.msra.mxu0 %v1569
        %1573 = vmatprep.subr.bf16.mxu0 0
        %1574 = vmatpush1.bf16.xpose.msra.mxu0 0
        %1575 = vmatprep.subr.bf16.mxu0 0
        %1576 = vmatpush1.bf16.xpose.msra.mxu0 0
        %1577 = vmatprep.subr.bf16.mxu0 0
        %1578 = vmatpush1.bf16.xpose.msra.mxu0 0
        %1579 = vmatprep.subr.bf16.mxu0 0
        %1580 = vmatpush1.bf16.xpose.msra.mxu0 0
        %1581 = vmatprep.subr.bf16.mxu0 0
        %1582 = vmatpush1.bf16.xpose.msra.mxu0 0
        %1583 = vmatprep.subr.bf16.mxu0 0
        %1584 = vmatpush1.bf16.xpose.msra.mxu0 0
        %1585 = vmatprep.subr.bf16.mxu0 0
        %1586 = vmatpush1.bf16.xpose.msra.mxu0 0
        %1587 = vmatprep.subr.bf16.mxu0 0
        %1588 = vmatpush1.bf16.xpose.msra.mxu0 0
        %1589 = vmatprep.subr.bf16.mxu0 0
        %1590 = vmatpush1.bf16.xpose.msra.mxu0 0
        %1591 = vmatprep.subr.bf16.mxu0 0
        %1592 = vmatpush1.bf16.xpose.msra.mxu0 0
        %1593 = vmatprep.subr.bf16.mxu0 0
        %1594 = vmatpush1.bf16.xpose.msra.mxu0 0
        %1595 = vmatprep.subr.bf16.mxu0 0
        %1596 = vmatpush1.bf16.xpose.msra.mxu0 0
        %1597 = vmatprep.subr.bf16.mxu0 0
        %1598 = vmatpush1.bf16.xpose.msra.mxu0 0
        %1599 = vmatprep.subr.bf16.mxu0 0
        %1600 = vmatpush1.bf16.xpose.msra.mxu0 0
        %1601 = vmatprep.subr.bf16.mxu0 0
        %1602 = vmatpush1.bf16.xpose.msra.mxu0 0
        %1603 = vmatprep.mubr.bf16.mxu0 0
        %1604 = vmatmul.mubr.bf16.gmra.mrb[0].mxu0 %v1566
        %v1605 = vpop.f32.mrb[0].mxu0
        %v1606 = vadd.f32 0.0, %v1605
        %v1607 = vpop.f32.mrb[0].mxu0
        %v1608 = vpop.f32.mrb[0].mxu0
        %v1609 = vadd.f32 0.0, %v1608
        %v1610 = vpop.f32.mrb[0].mxu0
        %1611 = vdwg.mxu0
        %v1613 = vsel %vm1517, %v923, 0
        %v1616 = vsel %vm1517, %v1219, 0
        %1618 = vmatprep.subr.bf16.mxu0 0
        %1619 = vmatpush1.bf16.xpose.msra.mxu0 %v1616
        %1620 = vmatprep.subr.bf16.mxu0 0
        %1621 = vmatpush1.bf16.xpose.msra.mxu0 0
        %1622 = vmatprep.subr.bf16.mxu0 0
        %1623 = vmatpush1.bf16.xpose.msra.mxu0 0
        %1624 = vmatprep.subr.bf16.mxu0 0
        %1625 = vmatpush1.bf16.xpose.msra.mxu0 0
        %1626 = vmatprep.subr.bf16.mxu0 0
        %1627 = vmatpush1.bf16.xpose.msra.mxu0 0
        %1628 = vmatprep.subr.bf16.mxu0 0
        %1629 = vmatpush1.bf16.xpose.msra.mxu0 0
        %1630 = vmatprep.subr.bf16.mxu0 0
        %1631 = vmatpush1.bf16.xpose.msra.mxu0 0
        %1632 = vmatprep.subr.bf16.mxu0 0
        %1633 = vmatpush1.bf16.xpose.msra.mxu0 0
        %1634 = vmatprep.subr.bf16.mxu0 0
        %1635 = vmatpush1.bf16.xpose.msra.mxu0 0
        %1636 = vmatprep.subr.bf16.mxu0 0
        %1637 = vmatpush1.bf16.xpose.msra.mxu0 0
        %1638 = vmatprep.subr.bf16.mxu0 0
        %1639 = vmatpush1.bf16.xpose.msra.mxu0 0
        %1640 = vmatprep.subr.bf16.mxu0 0
        %1641 = vmatpush1.bf16.xpose.msra.mxu0 0
        %1642 = vmatprep.subr.bf16.mxu0 0
        %1643 = vmatpush1.bf16.xpose.msra.mxu0 0
        %1644 = vmatprep.subr.bf16.mxu0 0
        %1645 = vmatpush1.bf16.xpose.msra.mxu0 0
        %1646 = vmatprep.subr.bf16.mxu0 0
        %1647 = vmatpush1.bf16.xpose.msra.mxu0 0
        %1648 = vmatprep.subr.bf16.mxu0 0
        %1649 = vmatpush1.bf16.xpose.msra.mxu0 0
        %1650 = vmatprep.mubr.bf16.mxu0 0
        %1651 = vmatmul.mubr.bf16.gmra.mrb[0].mxu0 %v1613
        %v1652 = vpop.f32.mrb[0].mxu0
        %v1653 = vadd.f32 0.0, %v1652
        %v1654 = vpop.f32.mrb[0].mxu0
        %v1655 = vpop.f32.mrb[0].mxu0
        %v1656 = vadd.f32 0.0, %v1655
        %v1657 = vpop.f32.mrb[0].mxu0
        %1658 = vdwg.mxu0
        %v1660 = vsel %vm1517, %v924, 0
        %v1663 = vsel %vm1517, %v1220, 0
        %1665 = vmatprep.subr.bf16.mxu0 0
        %1666 = vmatpush1.bf16.xpose.msra.mxu0 %v1663
        %1667 = vmatprep.subr.bf16.mxu0 0
        %1668 = vmatpush1.bf16.xpose.msra.mxu0 0
        %1669 = vmatprep.subr.bf16.mxu0 0
        %1670 = vmatpush1.bf16.xpose.msra.mxu0 0
        %1671 = vmatprep.subr.bf16.mxu0 0
        %1672 = vmatpush1.bf16.xpose.msra.mxu0 0
        %1673 = vmatprep.subr.bf16.mxu0 0
        %1674 = vmatpush1.bf16.xpose.msra.mxu0 0
        %1675 = vmatprep.subr.bf16.mxu0 0
        %1676 = vmatpush1.bf16.xpose.msra.mxu0 0
        %1677 = vmatprep.subr.bf16.mxu0 0
        %1678 = vmatpush1.bf16.xpose.msra.mxu0 0
        %1679 = vmatprep.subr.bf16.mxu0 0
        %1680 = vmatpush1.bf16.xpose.msra.mxu0 0
        %1681 = vmatprep.subr.bf16.mxu0 0
        %1682 = vmatpush1.bf16.xpose.msra.mxu0 0
        %1683 = vmatprep.subr.bf16.mxu0 0
        %1684 = vmatpush1.bf16.xpose.msra.mxu0 0
        %1685 = vmatprep.subr.bf16.mxu0 0
        %1686 = vmatpush1.bf16.xpose.msra.mxu0 0
        %1687 = vmatprep.subr.bf16.mxu0 0
        %1688 = vmatpush1.bf16.xpose.msra.mxu0 0
        %1689 = vmatprep.subr.bf16.mxu0 0
        %1690 = vmatpush1.bf16.xpose.msra.mxu0 0
        %1691 = vmatprep.subr.bf16.mxu0 0
        %1692 = vmatpush1.bf16.xpose.msra.mxu0 0
        %1693 = vmatprep.subr.bf16.mxu0 0
        %1694 = vmatpush1.bf16.xpose.msra.mxu0 0
        %1695 = vmatprep.subr.bf16.mxu0 0
        %1696 = vmatpush1.bf16.xpose.msra.mxu0 0
        %1697 = vmatprep.mubr.bf16.mxu0 0
        %1698 = vmatmul.mubr.bf16.gmra.mrb[0].mxu0 %v1660
        %v1699 = vpop.f32.mrb[0].mxu0
        %v1700 = vadd.f32 0.0, %v1699
        %v1701 = vpop.f32.mrb[0].mxu0
        %v1702 = vpop.f32.mrb[0].mxu0
        %v1703 = vadd.f32 0.0, %v1702
        %v1704 = vpop.f32.mrb[0].mxu0
        %1705 = vdwg.mxu0
        %v1706 = vld [vmem:[%s379] sm:$0xff]
        %v1707 = vld [vmem:[%s379 + $0x8] sm:$0xff]
        %vm1708 = vcmp.gt.f32.partialorder %v1706, 0.0
        %vm1709 = vcmp.gt.f32.partialorder %v1707, 0.0
        %v1710 = vsel %vm1708, 1, 0
        %v1711 = vsel %vm1709, 1, 0
        %1712 = vset.pattern.permute.xlu0 0
        %1713 = vperm.xlu0 %1712, %v1710
        %v1714 = vpop.permute.xlu0 %1713
        %1715 = vset.pattern.permute.xlu0 0
        %1716 = vperm.xlu0 %1715, %v1711
        %v1717 = vpop.permute.xlu0 %1716
        %vm1718 = vcmp.eq.s32.totalorder %v1714, 1
        %vm1719 = vcmp.eq.s32.totalorder %v1717, 1
        %v1720 = vsel %vm1718, -1e+09, %v1559
        %v1721 = vsel %vm1719, -1e+09, %v1562
        %v1722 = vsel %vm1718, -1e+09, %v1606
        %v1723 = vsel %vm1719, -1e+09, %v1609
        %v1724 = vsel %vm1718, -1e+09, %v1653
        %v1725 = vsel %vm1719, -1e+09, %v1656
        %v1726 = vsel %vm1718, -1e+09, %v1700
        %v1727 = vsel %vm1719, -1e+09, %v1703
        %vm1728 = vcmask 130048
        %v1729 = vsel %vm1728, %v1720, -inf
        %1730 = vmax.xlane.f32.xlu0 %v1729
        %v1731 = vpop.xlane.xlu0 %1730
        %v1732 = vsel %vm1728, %v1721, -inf
        %1733 = vmax.xlane.f32.xlu0 %v1732
        %v1734 = vpop.xlane.xlu0 %1733
        %v1735 = vsel %vm1728, %v1722, -inf
        %1736 = vmax.xlane.f32.xlu0 %v1735
        %v1737 = vpop.xlane.xlu0 %1736
        %v1738 = vsel %vm1728, %v1723, -inf
        %1739 = vmax.xlane.f32.xlu0 %v1738
        %v1740 = vpop.xlane.xlu0 %1739
        %v1741 = vsel %vm1728, %v1724, -inf
        %1742 = vmax.xlane.f32.xlu0 %v1741
        %v1743 = vpop.xlane.xlu0 %1742
        %v1744 = vsel %vm1728, %v1725, -inf
        %1745 = vmax.xlane.f32.xlu0 %v1744
        %v1746 = vpop.xlane.xlu0 %1745
        %v1747 = vsel %vm1728, %v1726, -inf
        %1748 = vmax.xlane.f32.xlu0 %v1747
        %v1749 = vpop.xlane.xlu0 %1748
        %v1750 = vsel %vm1728, %v1727, -inf
        %1751 = vmax.xlane.f32.xlu0 %v1750
        %v1752 = vpop.xlane.xlu0 %1751
        %v1753 = vsub.f32 %v1720, %v1731
        %v1754 = vsub.f32 %v1721, %v1734
        %v1755 = vsub.f32 %v1722, %v1737
        %v1756 = vsub.f32 %v1723, %v1740
        %v1757 = vsub.f32 %v1724, %v1743
        %v1758 = vsub.f32 %v1725, %v1746
        %v1759 = vsub.f32 %v1726, %v1749
        %v1760 = vsub.f32 %v1727, %v1752
        %v1761 = vmul.f32 %v1753, 1.442695
        %v1762 = vpow.pop %v1761
        %v1763 = vmul.f32 %v1754, 1.442695
        %v1764 = vpow.pop %v1763
        %v1765 = vmul.f32 %v1755, 1.442695
        %v1766 = vpow.pop %v1765
        %v1767 = vmul.f32 %v1756, 1.442695
        %v1768 = vpow.pop %v1767
        %v1769 = vmul.f32 %v1757, 1.442695
        %v1770 = vpow.pop %v1769
        %v1771 = vmul.f32 %v1758, 1.442695
        %v1772 = vpow.pop %v1771
        %v1773 = vmul.f32 %v1759, 1.442695
        %v1774 = vpow.pop %v1773
        %v1775 = vmul.f32 %v1760, 1.442695
        %v1776 = vpow.pop %v1775
        %v1777 = vsel %vm1728, %v1762, 0.0
        %1778 = vadd.xlane.f32.xlu0 %v1777
        %v1779 = vpop.xlane.xlu0 %1778
        %v1780 = vsel %vm1728, %v1764, 0.0
        %1781 = vadd.xlane.f32.xlu0 %v1780
        %v1782 = vpop.xlane.xlu0 %1781
        %v1783 = vsel %vm1728, %v1766, 0.0
        %1784 = vadd.xlane.f32.xlu0 %v1783
        %v1785 = vpop.xlane.xlu0 %1784
        %v1786 = vsel %vm1728, %v1768, 0.0
        %1787 = vadd.xlane.f32.xlu0 %v1786
        %v1788 = vpop.xlane.xlu0 %1787
        %v1789 = vsel %vm1728, %v1770, 0.0
        %1790 = vadd.xlane.f32.xlu0 %v1789
        %v1791 = vpop.xlane.xlu0 %1790
        %v1792 = vsel %vm1728, %v1772, 0.0
        %1793 = vadd.xlane.f32.xlu0 %v1792
        %v1794 = vpop.xlane.xlu0 %1793
        %v1795 = vsel %vm1728, %v1774, 0.0
        %1796 = vadd.xlane.f32.xlu0 %v1795
        %v1797 = vpop.xlane.xlu0 %1796
        %v1798 = vsel %vm1728, %v1776, 0.0
        %1799 = vadd.xlane.f32.xlu0 %v1798
        %v1800 = vpop.xlane.xlu0 %1799
        %v1801 = vrcp.pop %v1779
        %v1802 = vrcp.pop %v1782
        %v1803 = vrcp.pop %v1785
        %v1804 = vrcp.pop %v1788
        %v1805 = vrcp.pop %v1791
        %v1806 = vrcp.pop %v1794
        %v1807 = vrcp.pop %v1797
        %v1808 = vrcp.pop %v1800
        %v1809 = vmul.f32 %v1779, %v1801
        %v1810 = vmul.f32 %v1782, %v1802
        %v1811 = vmul.f32 %v1785, %v1803
        %v1812 = vmul.f32 %v1788, %v1804
        %v1813 = vmul.f32 %v1791, %v1805
        %v1814 = vmul.f32 %v1794, %v1806
        %v1815 = vmul.f32 %v1797, %v1807
        %v1816 = vmul.f32 %v1800, %v1808
        %v1817 = vsub.f32 2.0, %v1809
        %v1818 = vsub.f32 2.0, %v1810
        %v1819 = vsub.f32 2.0, %v1811
        %v1820 = vsub.f32 2.0, %v1812
        %v1821 = vsub.f32 2.0, %v1813
        %v1822 = vsub.f32 2.0, %v1814
        %v1823 = vsub.f32 2.0, %v1815
        %v1824 = vsub.f32 2.0, %v1816
        %v1825 = vmul.f32 %v1801, %v1817
        %v1826 = vmul.f32 %v1802, %v1818
        %v1827 = vmul.f32 %v1803, %v1819
        %v1828 = vmul.f32 %v1804, %v1820
        %v1829 = vmul.f32 %v1805, %v1821
        %v1830 = vmul.f32 %v1806, %v1822
        %v1831 = vmul.f32 %v1807, %v1823
        %v1832 = vmul.f32 %v1808, %v1824
        %v1833 = vmul.f32 %v1762, %v1825
        %v1834 = vmul.f32 %v1764, %v1826
        %v1835 = vmul.f32 %v1766, %v1827
        %v1836 = vmul.f32 %v1768, %v1828
        %v1837 = vmul.f32 %v1770, %v1829
        %v1838 = vmul.f32 %v1772, %v1830
        %v1839 = vmul.f32 %v1774, %v1831
        %v1840 = vmul.f32 %v1776, %v1832
        %v1841 = vpack.c.bf16 %v1834, %v1833
        %v1842 = vpack.c.bf16 %v1836, %v1835
        %v1843 = vpack.c.bf16 %v1838, %v1837
        %v1844 = vpack.c.bf16 %v1840, %v1839
        %v1846 = vsel %vm1728, %v1841, 0
        %1848 = vmatprep.subr.bf16.mxu0 0
        %1849 = vmatpush1.bf16.msra.mxu0 %v1513
        %1850 = vmatprep.subr.bf16.mxu0 0
        %1851 = vmatpush1.bf16.msra.mxu0 0
        %1852 = vmatprep.subr.bf16.mxu0 0
        %1853 = vmatpush1.bf16.msra.mxu0 0
        %1854 = vmatprep.subr.bf16.mxu0 0
        %1855 = vmatpush1.bf16.msra.mxu0 0
        %1856 = vmatprep.subr.bf16.mxu0 0
        %1857 = vmatpush1.bf16.msra.mxu0 0
        %1858 = vmatprep.subr.bf16.mxu0 0
        %1859 = vmatpush1.bf16.msra.mxu0 0
        %1860 = vmatprep.subr.bf16.mxu0 0
        %1861 = vmatpush1.bf16.msra.mxu0 0
        %1862 = vmatprep.subr.bf16.mxu0 0
        %1863 = vmatpush1.bf16.msra.mxu0 0
        %1864 = vmatprep.subr.bf16.mxu0 0
        %1865 = vmatpush1.bf16.msra.mxu0 0
        %1866 = vmatprep.subr.bf16.mxu0 0
        %1867 = vmatpush1.bf16.msra.mxu0 0
        %1868 = vmatprep.subr.bf16.mxu0 0
        %1869 = vmatpush1.bf16.msra.mxu0 0
        %1870 = vmatprep.subr.bf16.mxu0 0
        %1871 = vmatpush1.bf16.msra.mxu0 0
        %1872 = vmatprep.subr.bf16.mxu0 0
        %1873 = vmatpush1.bf16.msra.mxu0 0
        %1874 = vmatprep.subr.bf16.mxu0 0
        %1875 = vmatpush1.bf16.msra.mxu0 0
        %1876 = vmatprep.subr.bf16.mxu0 0
        %1877 = vmatpush1.bf16.msra.mxu0 0
        %1878 = vmatprep.subr.bf16.mxu0 0
        %1879 = vmatpush1.bf16.msra.mxu0 0
        %1880 = vmatprep.mubr.bf16.mxu0 0
        %1881 = vmatmul.mubr.bf16.gmra.mrb[0].mxu0 %v1846
        %v1882 = vpop.f32.mrb[0].mxu0
        %v1883 = vadd.f32 0.0, %v1882
        %v1884 = vpop.f32.mrb[0].mxu0
        %v1885 = vpop.f32.mrb[0].mxu0
        %v1886 = vadd.f32 0.0, %v1885
        %v1887 = vpop.f32.mrb[0].mxu0
        %1888 = vdwg.mxu0
        %v1890 = vsel %vm1728, %v1842, 0
        %1892 = vmatprep.subr.bf16.mxu0 0
        %1893 = vmatpush1.bf16.msra.mxu0 %v1514
        %1894 = vmatprep.subr.bf16.mxu0 0
        %1895 = vmatpush1.bf16.msra.mxu0 0
        %1896 = vmatprep.subr.bf16.mxu0 0
        %1897 = vmatpush1.bf16.msra.mxu0 0
        %1898 = vmatprep.subr.bf16.mxu0 0
        %1899 = vmatpush1.bf16.msra.mxu0 0
        %1900 = vmatprep.subr.bf16.mxu0 0
        %1901 = vmatpush1.bf16.msra.mxu0 0
        %1902 = vmatprep.subr.bf16.mxu0 0
        %1903 = vmatpush1.bf16.msra.mxu0 0
        %1904 = vmatprep.subr.bf16.mxu0 0
        %1905 = vmatpush1.bf16.msra.mxu0 0
        %1906 = vmatprep.subr.bf16.mxu0 0
        %1907 = vmatpush1.bf16.msra.mxu0 0
        %1908 = vmatprep.subr.bf16.mxu0 0
        %1909 = vmatpush1.bf16.msra.mxu0 0
        %1910 = vmatprep.subr.bf16.mxu0 0
        %1911 = vmatpush1.bf16.msra.mxu0 0
        %1912 = vmatprep.subr.bf16.mxu0 0
        %1913 = vmatpush1.bf16.msra.mxu0 0
        %1914 = vmatprep.subr.bf16.mxu0 0
        %1915 = vmatpush1.bf16.msra.mxu0 0
        %1916 = vmatprep.subr.bf16.mxu0 0
        %1917 = vmatpush1.bf16.msra.mxu0 0
        %1918 = vmatprep.subr.bf16.mxu0 0
        %1919 = vmatpush1.bf16.msra.mxu0 0
        %1920 = vmatprep.subr.bf16.mxu0 0
        %1921 = vmatpush1.bf16.msra.mxu0 0
        %1922 = vmatprep.subr.bf16.mxu0 0
        %1923 = vmatpush1.bf16.msra.mxu0 0
        %1924 = vmatprep.mubr.bf16.mxu0 0
        %1925 = vmatmul.mubr.bf16.gmra.mrb[0].mxu0 %v1890
        %v1926 = vpop.f32.mrb[0].mxu0
        %v1927 = vadd.f32 0.0, %v1926
        %v1928 = vpop.f32.mrb[0].mxu0
        %v1929 = vpop.f32.mrb[0].mxu0
        %v1930 = vadd.f32 0.0, %v1929
        %v1931 = vpop.f32.mrb[0].mxu0
        %1932 = vdwg.mxu0
        %v1934 = vsel %vm1728, %v1843, 0
        %1936 = vmatprep.subr.bf16.mxu0 0
        %1937 = vmatpush1.bf16.msra.mxu0 %v1515
        %1938 = vmatprep.subr.bf16.mxu0 0
        %1939 = vmatpush1.bf16.msra.mxu0 0
        %1940 = vmatprep.subr.bf16.mxu0 0
        %1941 = vmatpush1.bf16.msra.mxu0 0
        %1942 = vmatprep.subr.bf16.mxu0 0
        %1943 = vmatpush1.bf16.msra.mxu0 0
        %1944 = vmatprep.subr.bf16.mxu0 0
        %1945 = vmatpush1.bf16.msra.mxu0 0
        %1946 = vmatprep.subr.bf16.mxu0 0
        %1947 = vmatpush1.bf16.msra.mxu0 0
        %1948 = vmatprep.subr.bf16.mxu0 0
        %1949 = vmatpush1.bf16.msra.mxu0 0
        %1950 = vmatprep.subr.bf16.mxu0 0
        %1951 = vmatpush1.bf16.msra.mxu0 0
        %1952 = vmatprep.subr.bf16.mxu0 0
        %1953 = vmatpush1.bf16.msra.mxu0 0
        %1954 = vmatprep.subr.bf16.mxu0 0
        %1955 = vmatpush1.bf16.msra.mxu0 0
        %1956 = vmatprep.subr.bf16.mxu0 0
        %1957 = vmatpush1.bf16.msra.mxu0 0
        %1958 = vmatprep.subr.bf16.mxu0 0
        %1959 = vmatpush1.bf16.msra.mxu0 0
        %1960 = vmatprep.subr.bf16.mxu0 0
        %1961 = vmatpush1.bf16.msra.mxu0 0
        %1962 = vmatprep.subr.bf16.mxu0 0
        %1963 = vmatpush1.bf16.msra.mxu0 0
        %1964 = vmatprep.subr.bf16.mxu0 0
        %1965 = vmatpush1.bf16.msra.mxu0 0
        %1966 = vmatprep.subr.bf16.mxu0 0
        %1967 = vmatpush1.bf16.msra.mxu0 0
        %1968 = vmatprep.mubr.bf16.mxu0 0
        %1969 = vmatmul.mubr.bf16.gmra.mrb[0].mxu0 %v1934
        %v1970 = vpop.f32.mrb[0].mxu0
        %v1971 = vadd.f32 0.0, %v1970
        %v1972 = vpop.f32.mrb[0].mxu0
        %v1973 = vpop.f32.mrb[0].mxu0
        %v1974 = vadd.f32 0.0, %v1973
        %v1975 = vpop.f32.mrb[0].mxu0
        %1976 = vdwg.mxu0
        %v1978 = vsel %vm1728, %v1844, 0
        %1980 = vmatprep.subr.bf16.mxu0 0
        %1981 = vmatpush1.bf16.msra.mxu0 %v1516
        %1982 = vmatprep.subr.bf16.mxu0 0
        %1983 = vmatpush1.bf16.msra.mxu0 0
        %1984 = vmatprep.subr.bf16.mxu0 0
        %1985 = vmatpush1.bf16.msra.mxu0 0
        %1986 = vmatprep.subr.bf16.mxu0 0
        %1987 = vmatpush1.bf16.msra.mxu0 0
        %1988 = vmatprep.subr.bf16.mxu0 0
        %1989 = vmatpush1.bf16.msra.mxu0 0
        %1990 = vmatprep.subr.bf16.mxu0 0
        %1991 = vmatpush1.bf16.msra.mxu0 0
        %1992 = vmatprep.subr.bf16.mxu0 0
        %1993 = vmatpush1.bf16.msra.mxu0 0
        %1994 = vmatprep.subr.bf16.mxu0 0
        %1995 = vmatpush1.bf16.msra.mxu0 0
        %1996 = vmatprep.subr.bf16.mxu0 0
        %1997 = vmatpush1.bf16.msra.mxu0 0
        %1998 = vmatprep.subr.bf16.mxu0 0
        %1999 = vmatpush1.bf16.msra.mxu0 0
        %2000 = vmatprep.subr.bf16.mxu0 0
        %2001 = vmatpush1.bf16.msra.mxu0 0
        %2002 = vmatprep.subr.bf16.mxu0 0
        %2003 = vmatpush1.bf16.msra.mxu0 0
        %2004 = vmatprep.subr.bf16.mxu0 0
        %2005 = vmatpush1.bf16.msra.mxu0 0
        %2006 = vmatprep.subr.bf16.mxu0 0
        %2007 = vmatpush1.bf16.msra.mxu0 0
        %2008 = vmatprep.subr.bf16.mxu0 0
        %2009 = vmatpush1.bf16.msra.mxu0 0
        %2010 = vmatprep.subr.bf16.mxu0 0
        %2011 = vmatpush1.bf16.msra.mxu0 0
        %2012 = vmatprep.mubr.bf16.mxu0 0
        %2013 = vmatmul.mubr.bf16.gmra.mrb[0].mxu0 %v1978
        %v2014 = vpop.f32.mrb[0].mxu0
        %v2015 = vadd.f32 0.0, %v2014
        %v2016 = vpop.f32.mrb[0].mxu0
        %v2017 = vpop.f32.mrb[0].mxu0
        %v2018 = vadd.f32 0.0, %v2017
        %v2019 = vpop.f32.mrb[0].mxu0
        %2020 = vdwg.mxu0
        %v2021 = vcombine.low %v1883, %v1971
        %v2022 = vcombine.high %v1883, %v1971
        %v2024 = vunpack.c.l.s4 1983009808
        %v2025 = vunpack.c.0.s8 %v2024
        %v2026 = vlaneseq
        %v2027 = vshrl.u32 %v2026, 7
        %v2028 = vsub.s32 %v2025, %v2027
        %v2029 = vrot.slane %v2021, %v2028
        %v2031 = vunpack.c.l.s4 1983009808
        %v2032 = vunpack.c.0.s8 %v2031
        %v2033 = vlaneseq
        %v2034 = vshrl.u32 %v2033, 7
        %v2035 = vsub.s32 %v2032, %v2034
        %v2036 = vrot.slane %v2022, %v2035
        %v2037 = vcombine.low %v1927, %v2015
        %v2038 = vcombine.high %v1927, %v2015
        %v2040 = vunpack.c.l.s4 1983009808
        %v2041 = vunpack.c.0.s8 %v2040
        %v2042 = vlaneseq
        %v2043 = vshrl.u32 %v2042, 7
        %v2044 = vsub.s32 %v2041, %v2043
        %v2045 = vrot.slane %v2037, %v2044
        %v2047 = vunpack.c.l.s4 1983009808
        %v2048 = vunpack.c.0.s8 %v2047
        %v2049 = vlaneseq
        %v2050 = vshrl.u32 %v2049, 7
        %v2051 = vsub.s32 %v2048, %v2050
        %v2052 = vrot.slane %v2038, %v2051
        %v2053 = vcombine.low %v2029, %v2045
        %v2054 = vcombine.high %v2029, %v2045
        %v2056 = vunpack.c.l.s4 1934713408
        %v2057 = vunpack.c.0.s8 %v2056
        %v2058 = vlaneseq
        %v2059 = vshrl.u32 %v2058, 7
        %v2060 = vsub.s32 %v2057, %v2059
        %v2061 = vrot.slane %v2053, %v2060
        %v2063 = vunpack.c.l.s4 1934713408
        %v2064 = vunpack.c.0.s8 %v2063
        %v2065 = vlaneseq
        %v2066 = vshrl.u32 %v2065, 7
        %v2067 = vsub.s32 %v2064, %v2066
        %v2068 = vrot.slane %v2054, %v2067
        %v2069 = vcombine.low %v2036, %v2052
        %v2070 = vcombine.high %v2036, %v2052
        %v2072 = vunpack.c.l.s4 1934713408
        %v2073 = vunpack.c.0.s8 %v2072
        %v2074 = vlaneseq
        %v2075 = vshrl.u32 %v2074, 7
        %v2076 = vsub.s32 %v2073, %v2075
        %v2077 = vrot.slane %v2069, %v2076
        %v2079 = vunpack.c.l.s4 1934713408
        %v2080 = vunpack.c.0.s8 %v2079
        %v2081 = vlaneseq
        %v2082 = vshrl.u32 %v2081, 7
        %v2083 = vsub.s32 %v2080, %v2082
        %v2084 = vrot.slane %v2070, %v2083
        %v2085 = vcombine.high %v2061, 0.0
        %v2086 = vcombine.high %v2068, 0.0
        %v2087 = vcombine.high %v2077, 0.0
        %v2088 = vcombine.high %v2084, 0.0
        %v2089 = vcombine.low %v1886, %v1974
        %v2090 = vcombine.high %v1886, %v1974
        %v2092 = vunpack.c.l.s4 1983009808
        %v2093 = vunpack.c.0.s8 %v2092
        %v2094 = vlaneseq
        %v2095 = vshrl.u32 %v2094, 7
        %v2096 = vsub.s32 %v2093, %v2095
        %v2097 = vrot.slane %v2089, %v2096
        %v2099 = vunpack.c.l.s4 1983009808
        %v2100 = vunpack.c.0.s8 %v2099
        %v2101 = vlaneseq
        %v2102 = vshrl.u32 %v2101, 7
        %v2103 = vsub.s32 %v2100, %v2102
        %v2104 = vrot.slane %v2090, %v2103
        %v2105 = vcombine.low %v1930, %v2018
        %v2106 = vcombine.high %v1930, %v2018
        %v2108 = vunpack.c.l.s4 1983009808
        %v2109 = vunpack.c.0.s8 %v2108
        %v2110 = vlaneseq
        %v2111 = vshrl.u32 %v2110, 7
        %v2112 = vsub.s32 %v2109, %v2111
        %v2113 = vrot.slane %v2105, %v2112
        %v2115 = vunpack.c.l.s4 1983009808
        %v2116 = vunpack.c.0.s8 %v2115
        %v2117 = vlaneseq
        %v2118 = vshrl.u32 %v2117, 7
        %v2119 = vsub.s32 %v2116, %v2118
        %v2120 = vrot.slane %v2106, %v2119
        %v2121 = vcombine.low %v2097, %v2113
        %v2122 = vcombine.high %v2097, %v2113
        %v2124 = vunpack.c.l.s4 1934713408
        %v2125 = vunpack.c.0.s8 %v2124
        %v2126 = vlaneseq
        %v2127 = vshrl.u32 %v2126, 7
        %v2128 = vsub.s32 %v2125, %v2127
        %v2129 = vrot.slane %v2121, %v2128
        %v2131 = vunpack.c.l.s4 1934713408
        %v2132 = vunpack.c.0.s8 %v2131
        %v2133 = vlaneseq
        %v2134 = vshrl.u32 %v2133, 7
        %v2135 = vsub.s32 %v2132, %v2134
        %v2136 = vrot.slane %v2122, %v2135
        %v2137 = vcombine.low %v2104, %v2120
        %v2138 = vcombine.high %v2104, %v2120
        %v2140 = vunpack.c.l.s4 1934713408
        %v2141 = vunpack.c.0.s8 %v2140
        %v2142 = vlaneseq
        %v2143 = vshrl.u32 %v2142, 7
        %v2144 = vsub.s32 %v2141, %v2143
        %v2145 = vrot.slane %v2137, %v2144
        %v2147 = vunpack.c.l.s4 1934713408
        %v2148 = vunpack.c.0.s8 %v2147
        %v2149 = vlaneseq
        %v2150 = vshrl.u32 %v2149, 7
        %v2151 = vsub.s32 %v2148, %v2150
        %v2152 = vrot.slane %v2138, %v2151
        %v2153 = vcombine.high %v2129, 0.0
        %v2154 = vcombine.high %v2136, 0.0
        %v2155 = vcombine.high %v2145, 0.0
        %v2156 = vcombine.high %v2152, 0.0
        %v2157 = vcombine.low %v2061, %v2068
        %v2159 = vunpack.c.l.s4 1983009808
        %v2160 = vunpack.c.0.s8 %v2159
        %v2161 = vlaneseq
        %v2162 = vshrl.u32 %v2161, 7
        %v2163 = vsub.s32 %v2160, %v2162
        %v2164 = vrot.slane %v2157, %v2163
        %v2165 = vcombine.low %v2085, %v2086
        %v2167 = vunpack.c.l.s4 1983009808
        %v2168 = vunpack.c.0.s8 %v2167
        %v2169 = vlaneseq
        %v2170 = vshrl.u32 %v2169, 7
        %v2171 = vsub.s32 %v2168, %v2170
        %v2172 = vrot.slane %v2165, %v2171
        %v2173 = vcombine.low %v2077, %v2084
        %v2175 = vunpack.c.l.s4 1983009808
        %v2176 = vunpack.c.0.s8 %v2175
        %v2177 = vlaneseq
        %v2178 = vshrl.u32 %v2177, 7
        %v2179 = vsub.s32 %v2176, %v2178
        %v2180 = vrot.slane %v2173, %v2179
        %v2181 = vcombine.low %v2087, %v2088
        %v2183 = vunpack.c.l.s4 1983009808
        %v2184 = vunpack.c.0.s8 %v2183
        %v2185 = vlaneseq
        %v2186 = vshrl.u32 %v2185, 7
        %v2187 = vsub.s32 %v2184, %v2186
        %v2188 = vrot.slane %v2181, %v2187
        %v2189 = vcombine.low %v2164, %v2172
        %v2190 = vcombine.high %v2164, %v2172
        %v2192 = vunpack.c.l.s4 1934713408
        %v2193 = vunpack.c.0.s8 %v2192
        %v2194 = vlaneseq
        %v2195 = vshrl.u32 %v2194, 7
        %v2196 = vsub.s32 %v2193, %v2195
        %v2197 = vrot.slane %v2189, %v2196
        %v2199 = vunpack.c.l.s4 1934713408
        %v2200 = vunpack.c.0.s8 %v2199
        %v2201 = vlaneseq
        %v2202 = vshrl.u32 %v2201, 7
        %v2203 = vsub.s32 %v2200, %v2202
        %v2204 = vrot.slane %v2190, %v2203
        %v2205 = vcombine.low %v2180, %v2188
        %v2206 = vcombine.high %v2180, %v2188
        %v2208 = vunpack.c.l.s4 1934713408
        %v2209 = vunpack.c.0.s8 %v2208
        %v2210 = vlaneseq
        %v2211 = vshrl.u32 %v2210, 7
        %v2212 = vsub.s32 %v2209, %v2211
        %v2213 = vrot.slane %v2205, %v2212
        %v2215 = vunpack.c.l.s4 1934713408
        %v2216 = vunpack.c.0.s8 %v2215
        %v2217 = vlaneseq
        %v2218 = vshrl.u32 %v2217, 7
        %v2219 = vsub.s32 %v2216, %v2218
        %v2220 = vrot.slane %v2206, %v2219
        %v2221 = vcombine.low %v2197, %v2213
        %v2222 = vcombine.high %v2197, %v2213
        %v2223 = vcombine.low %v2204, %v2220
        %v2224 = vcombine.high %v2204, %v2220
        %v2225 = vcombine.low %v2129, %v2136
        %v2227 = vunpack.c.l.s4 1983009808
        %v2228 = vunpack.c.0.s8 %v2227
        %v2229 = vlaneseq
        %v2230 = vshrl.u32 %v2229, 7
        %v2231 = vsub.s32 %v2228, %v2230
        %v2232 = vrot.slane %v2225, %v2231
        %v2233 = vcombine.low %v2153, %v2154
        %v2235 = vunpack.c.l.s4 1983009808
        %v2236 = vunpack.c.0.s8 %v2235
        %v2237 = vlaneseq
        %v2238 = vshrl.u32 %v2237, 7
        %v2239 = vsub.s32 %v2236, %v2238
        %v2240 = vrot.slane %v2233, %v2239
        %v2241 = vcombine.low %v2145, %v2152
        %v2243 = vunpack.c.l.s4 1983009808
        %v2244 = vunpack.c.0.s8 %v2243
        %v2245 = vlaneseq
        %v2246 = vshrl.u32 %v2245, 7
        %v2247 = vsub.s32 %v2244, %v2246
        %v2248 = vrot.slane %v2241, %v2247
        %v2249 = vcombine.low %v2155, %v2156
        %v2251 = vunpack.c.l.s4 1983009808
        %v2252 = vunpack.c.0.s8 %v2251
        %v2253 = vlaneseq
        %v2254 = vshrl.u32 %v2253, 7
        %v2255 = vsub.s32 %v2252, %v2254
        %v2256 = vrot.slane %v2249, %v2255
        %v2257 = vcombine.low %v2232, %v2240
        %v2258 = vcombine.high %v2232, %v2240
        %v2260 = vunpack.c.l.s4 1934713408
        %v2261 = vunpack.c.0.s8 %v2260
        %v2262 = vlaneseq
        %v2263 = vshrl.u32 %v2262, 7
        %v2264 = vsub.s32 %v2261, %v2263
        %v2265 = vrot.slane %v2257, %v2264
        %v2267 = vunpack.c.l.s4 1934713408
        %v2268 = vunpack.c.0.s8 %v2267
        %v2269 = vlaneseq
        %v2270 = vshrl.u32 %v2269, 7
        %v2271 = vsub.s32 %v2268, %v2270
        %v2272 = vrot.slane %v2258, %v2271
        %v2273 = vcombine.low %v2248, %v2256
        %v2274 = vcombine.high %v2248, %v2256
        %v2276 = vunpack.c.l.s4 1934713408
        %v2277 = vunpack.c.0.s8 %v2276
        %v2278 = vlaneseq
        %v2279 = vshrl.u32 %v2278, 7
        %v2280 = vsub.s32 %v2277, %v2279
        %v2281 = vrot.slane %v2273, %v2280
        %v2283 = vunpack.c.l.s4 1934713408
        %v2284 = vunpack.c.0.s8 %v2283
        %v2285 = vlaneseq
        %v2286 = vshrl.u32 %v2285, 7
        %v2287 = vsub.s32 %v2284, %v2286
        %v2288 = vrot.slane %v2274, %v2287
        %v2289 = vcombine.low %v2265, %v2281
        %v2290 = vcombine.high %v2265, %v2281
        %v2291 = vcombine.low %v2272, %v2288
        %v2292 = vcombine.high %v2272, %v2288
        %2295 = vrot.lane.b32.xlu0 %v2222, 32
        %v2296 = vpop.permute.xlu0 %2295
        %2297 = vrot.lane.b32.xlu0 %v2290, 32
        %v2298 = vpop.permute.xlu0 %2297
        %2303 = vrot.lane.b32.xlu0 %v2223, 64
        %v2304 = vpop.permute.xlu0 %2303
        %2305 = vrot.lane.b32.xlu0 %v2291, 64
        %v2306 = vpop.permute.xlu0 %2305
        %2311 = vrot.lane.b32.xlu0 %v2224, 96
        %v2312 = vpop.permute.xlu0 %2311
        %2313 = vrot.lane.b32.xlu0 %v2292, 96
        %v2314 = vpop.permute.xlu0 %2313
        %v2317 = vsel %vm1517, %v2221, %v2296
        %v2318 = vsel %vm1517, %v2289, %v2298
        %vm2319 = vcmask 523264
        %v2320 = vsel %vm2319, %v2317, %v2304
        %v2321 = vsel %vm2319, %v2318, %v2306
        %vm2322 = vcmask 785408
        %v2323 = vsel %vm2322, %v2320, %v2312
        %v2324 = vsel %vm2322, %v2321, %v2314
        %v2325 = vpack.c.bf16 %v2324, %v2323
        %v2326 = vld [vmem:[%s3] sm:$0xf]
        %v2327 = vld [vmem:[%s3 + $0x4] sm:$0xf]
        %v2328 = vld [vmem:[%s3 + $0x8] sm:$0xf]
        %v2329 = vld [vmem:[%s3 + $0xc] sm:$0xf]
        %v2330 = vld [vmem:[%s3 + $0x10] sm:$0xf]
        %v2331 = vld [vmem:[%s3 + $0x14] sm:$0xf]
        %v2332 = vld [vmem:[%s3 + $0x18] sm:$0xf]
        %v2333 = vld [vmem:[%s3 + $0x1c] sm:$0xf]
        %v2334 = vld [vmem:[%s3 + $0x20] sm:$0xf]
        %v2335 = vld [vmem:[%s3 + $0x24] sm:$0xf]
        %v2336 = vld [vmem:[%s3 + $0x28] sm:$0xf]
        %v2337 = vld [vmem:[%s3 + $0x2c] sm:$0xf]
        %v2338 = vld [vmem:[%s3 + $0x30] sm:$0xf]
        %v2339 = vld [vmem:[%s3 + $0x34] sm:$0xf]
        %v2340 = vld [vmem:[%s3 + $0x38] sm:$0xf]
        %v2341 = vld [vmem:[%s3 + $0x3c] sm:$0xf]
        %v2358 = vunpack.c.l.b16 %v2326
        %v2359 = vunpack.c.l.b16 %v2327
        %v2360 = vunpack.c.l.b16 %v2328
        %v2361 = vunpack.c.l.b16 %v2329
        %v2362 = vunpack.c.l.b16 %v2330
        %v2363 = vunpack.c.l.b16 %v2331
        %v2364 = vunpack.c.l.b16 %v2332
        %v2365 = vunpack.c.l.b16 %v2333
        %v2366 = vunpack.c.l.b16 %v2334
        %v2367 = vunpack.c.l.b16 %v2335
        %v2368 = vunpack.c.l.b16 %v2336
        %v2369 = vunpack.c.l.b16 %v2337
        %v2370 = vunpack.c.l.b16 %v2338
        %v2371 = vunpack.c.l.b16 %v2339
        %v2372 = vunpack.c.l.b16 %v2340
        %v2373 = vunpack.c.l.b16 %v2341
        %v2374 = vpack.c.b16 %v2359, %v2358
        %v2375 = vpack.c.b16 %v2361, %v2360
        %v2376 = vpack.c.b16 %v2363, %v2362
        %v2377 = vpack.c.b16 %v2365, %v2364
        %v2378 = vpack.c.b16 %v2367, %v2366
        %v2379 = vpack.c.b16 %v2369, %v2368
        %v2380 = vpack.c.b16 %v2371, %v2370
        %v2381 = vpack.c.b16 %v2373, %v2372
        %2390 = vmatprep.subr.bf16.mxu0 0
        %2391 = vmatpush1.bf16.msra.mxu0 %v2374
        %2392 = vmatprep.subr.bf16.mxu0 0
        %2393 = vmatpush1.bf16.msra.mxu0 %v2375
        %2394 = vmatprep.subr.bf16.mxu0 0
        %2395 = vmatpush1.bf16.msra.mxu0 %v2376
        %2396 = vmatprep.subr.bf16.mxu0 0
        %2397 = vmatpush1.bf16.msra.mxu0 %v2377
        %2398 = vmatprep.subr.bf16.mxu0 0
        %2399 = vmatpush1.bf16.msra.mxu0 %v2378
        %2400 = vmatprep.subr.bf16.mxu0 0
        %2401 = vmatpush1.bf16.msra.mxu0 %v2379
        %2402 = vmatprep.subr.bf16.mxu0 0
        %2403 = vmatpush1.bf16.msra.mxu0 %v2380
        %2404 = vmatprep.subr.bf16.mxu0 0
        %2405 = vmatpush1.bf16.msra.mxu0 %v2381
        %2406 = vmatprep.subr.bf16.mxu0 0
        %2407 = vmatpush1.bf16.msra.mxu0 0
        %2408 = vmatprep.subr.bf16.mxu0 0
        %2409 = vmatpush1.bf16.msra.mxu0 0
        %2410 = vmatprep.subr.bf16.mxu0 0
        %2411 = vmatpush1.bf16.msra.mxu0 0
        %2412 = vmatprep.subr.bf16.mxu0 0
        %2413 = vmatpush1.bf16.msra.mxu0 0
        %2414 = vmatprep.subr.bf16.mxu0 0
        %2415 = vmatpush1.bf16.msra.mxu0 0
        %2416 = vmatprep.subr.bf16.mxu0 0
        %2417 = vmatpush1.bf16.msra.mxu0 0
        %2418 = vmatprep.subr.bf16.mxu0 0
        %2419 = vmatpush1.bf16.msra.mxu0 0
        %2420 = vmatprep.subr.bf16.mxu0 0
        %2421 = vmatpush1.bf16.msra.mxu0 0
        %2422 = vmatprep.mubr.bf16.mxu0 0
        %2423 = vmatmul.mubr.bf16.gmra.mrb[0].mxu0 %v2325
        %v2424 = vpop.f32.mrb[0].mxu0
        %v2425 = vadd.f32 0.0, %v2424
        %v2426 = vpop.f32.mrb[0].mxu0
        %v2427 = vpop.f32.mrb[0].mxu0
        %v2428 = vadd.f32 0.0, %v2427
        %v2429 = vpop.f32.mrb[0].mxu0
        %2430 = vdwg.mxu0
        %v2431 = vld [vmem:[%s4] sm:$0x1]
        %v2432 = vld [vmem:[%s5] sm:$0x1]
        %v2433 = vadd.f32 %v382, %v2425
        %v2434 = vadd.f32 %v383, %v2428
        %2435 = vadd.xlane.f32.xlu0 %v2433
        %v2436 = vpop.xlane.xlu0 %2435
        %2437 = vadd.xlane.f32.xlu0 %v2434
        %v2438 = vpop.xlane.xlu0 %2437
        %v2439 = vrcp.pop 128.0
        %v2440 = vmul.f32 %v2436, %v2439
        %v2441 = vmul.f32 %v2438, %v2439
        %v2442 = vsub.f32 %v2433, %v2440
        %v2443 = vsub.f32 %v2434, %v2441
        %v2444 = vmul.f32 %v2442, %v2442
        %v2445 = vmul.f32 %v2443, %v2443
        %2446 = vadd.xlane.f32.xlu0 %v2444
        %v2447 = vpop.xlane.xlu0 %2446
        %2448 = vadd.xlane.f32.xlu0 %v2445
        %v2449 = vpop.xlane.xlu0 %2448
        %v2450 = vmul.f32 %v2447, %v2439
        %v2451 = vmul.f32 %v2449, %v2439
        %v2452 = vadd.f32 %v2450, 1e-05
        %v2453 = vadd.f32 %v2451, 1e-05
        %v2454 = vrsqrt.pop %v2452
        %v2455 = vrsqrt.pop %v2453
        %v2456 = vmul.f32 %v2442, %v2454
        %v2457 = vmul.f32 %v2443, %v2455
        %v2459 = vlaneseq
        %v2460 = vshrl.u32 %v2459, 7
        %v2461 = vsub.s32 0, %v2460
        %v2462 = vrot.slane %v2431, %v2461
        %v2464 = vmul.f32 %v2456, %v2462
        %v2465 = vmul.f32 %v2457, %v2462
        %v2467 = vlaneseq
        %v2468 = vshrl.u32 %v2467, 7
        %v2469 = vsub.s32 0, %v2468
        %v2470 = vrot.slane %v2432, %v2469
        %v2472 = vadd.f32 %v2464, %v2470
        %v2473 = vadd.f32 %v2465, %v2470
        %v2474 = vpack.c.bf16 %v2473, %v2472
        %v2475 = vld [vmem:[%s6] sm:$0xff]
        %v2476 = vld [vmem:[%s6 + $0x8] sm:$0xff]
        %v2477 = vld [vmem:[%s6 + $0x10] sm:$0xff]
        %v2478 = vld [vmem:[%s6 + $0x18] sm:$0xff]
        %v2479 = vld [vmem:[%s6 + $0x20] sm:$0xff]
        %v2480 = vld [vmem:[%s6 + $0x28] sm:$0xff]
        %v2481 = vld [vmem:[%s6 + $0x30] sm:$0xff]
        %v2482 = vld [vmem:[%s6 + $0x38] sm:$0xff]
        %v2483 = vld [vmem:[%s6 + $0x40] sm:$0xff]
        %v2484 = vld [vmem:[%s6 + $0x48] sm:$0xff]
        %v2485 = vld [vmem:[%s6 + $0x50] sm:$0xff]
        %v2486 = vld [vmem:[%s6 + $0x58] sm:$0xff]
        %v2487 = vld [vmem:[%s6 + $0x60] sm:$0xff]
        %v2488 = vld [vmem:[%s6 + $0x68] sm:$0xff]
        %v2489 = vld [vmem:[%s6 + $0x70] sm:$0xff]
        %v2490 = vld [vmem:[%s6 + $0x78] sm:$0xff]
        %v2491 = vld [vmem:[%s6 + $0x80] sm:$0xff]
        %v2492 = vld [vmem:[%s6 + $0x88] sm:$0xff]
        %v2493 = vld [vmem:[%s6 + $0x90] sm:$0xff]
        %v2494 = vld [vmem:[%s6 + $0x98] sm:$0xff]
        %v2495 = vld [vmem:[%s6 + $0xa0] sm:$0xff]
        %v2496 = vld [vmem:[%s6 + $0xa8] sm:$0xff]
        %v2497 = vld [vmem:[%s6 + $0xb0] sm:$0xff]
        %v2498 = vld [vmem:[%s6 + $0xb8] sm:$0xff]
        %v2499 = vld [vmem:[%s6 + $0xc0] sm:$0xff]
        %v2500 = vld [vmem:[%s6 + $0xc8] sm:$0xff]
        %v2501 = vld [vmem:[%s6 + $0xd0] sm:$0xff]
        %v2502 = vld [vmem:[%s6 + $0xd8] sm:$0xff]
        %v2503 = vld [vmem:[%s6 + $0xe0] sm:$0xff]
        %v2504 = vld [vmem:[%s6 + $0xe8] sm:$0xff]
        %v2505 = vld [vmem:[%s6 + $0xf0] sm:$0xff]
        %v2506 = vld [vmem:[%s6 + $0xf8] sm:$0xff]
        %v2507 = vld [vmem:[%s7] sm:$0xf]
        %v2509 = vlaneseq
        %v2510 = vshrl.u32 %v2509, 7
        %v2511 = vsub.s32 0, %v2510
        %v2512 = vrot.slane %v2507, %v2511
        %v2513 = vlaneseq
        %v2514 = vshrl.u32 %v2513, 7
        %v2515 = vsub.s32 1, %v2514
        %v2516 = vrot.slane %v2507, %v2515
        %v2517 = vlaneseq
        %v2518 = vshrl.u32 %v2517, 7
        %v2519 = vsub.s32 2, %v2518
        %v2520 = vrot.slane %v2507, %v2519
        %v2521 = vlaneseq
        %v2522 = vshrl.u32 %v2521, 7
        %v2523 = vsub.s32 3, %v2522
        %v2524 = vrot.slane %v2507, %v2523
        %v2561 = vunpack.c.l.b16 %v2475
        %v2562 = vunpack.c.h.b16 %v2475
        %v2563 = vunpack.c.l.b16 %v2476
        %v2564 = vunpack.c.h.b16 %v2476
        %v2565 = vunpack.c.l.b16 %v2477
        %v2566 = vunpack.c.h.b16 %v2477
        %v2567 = vunpack.c.l.b16 %v2478
        %v2568 = vunpack.c.h.b16 %v2478
        %v2569 = vunpack.c.l.b16 %v2479
        %v2570 = vunpack.c.h.b16 %v2479
        %v2571 = vunpack.c.l.b16 %v2480
        %v2572 = vunpack.c.h.b16 %v2480
        %v2573 = vunpack.c.l.b16 %v2481
        %v2574 = vunpack.c.h.b16 %v2481
        %v2575 = vunpack.c.l.b16 %v2482
        %v2576 = vunpack.c.h.b16 %v2482
        %v2577 = vunpack.c.l.b16 %v2483
        %v2578 = vunpack.c.h.b16 %v2483
        %v2579 = vunpack.c.l.b16 %v2484
        %v2580 = vunpack.c.h.b16 %v2484
        %v2581 = vunpack.c.l.b16 %v2485
        %v2582 = vunpack.c.h.b16 %v2485
        %v2583 = vunpack.c.l.b16 %v2486
        %v2584 = vunpack.c.h.b16 %v2486
        %v2585 = vunpack.c.l.b16 %v2487
        %v2586 = vunpack.c.h.b16 %v2487
        %v2587 = vunpack.c.l.b16 %v2488
        %v2588 = vunpack.c.h.b16 %v2488
        %v2589 = vunpack.c.l.b16 %v2489
        %v2590 = vunpack.c.h.b16 %v2489
        %v2591 = vunpack.c.l.b16 %v2490
        %v2592 = vunpack.c.h.b16 %v2490
        %v2593 = vunpack.c.l.b16 %v2491
        %v2594 = vunpack.c.h.b16 %v2491
        %v2595 = vunpack.c.l.b16 %v2492
        %v2596 = vunpack.c.h.b16 %v2492
        %v2597 = vunpack.c.l.b16 %v2493
        %v2598 = vunpack.c.h.b16 %v2493
        %v2599 = vunpack.c.l.b16 %v2494
        %v2600 = vunpack.c.h.b16 %v2494
        %v2601 = vunpack.c.l.b16 %v2495
        %v2602 = vunpack.c.h.b16 %v2495
        %v2603 = vunpack.c.l.b16 %v2496
        %v2604 = vunpack.c.h.b16 %v2496
        %v2605 = vunpack.c.l.b16 %v2497
        %v2606 = vunpack.c.h.b16 %v2497
        %v2607 = vunpack.c.l.b16 %v2498
        %v2608 = vunpack.c.h.b16 %v2498
        %v2609 = vunpack.c.l.b16 %v2499
        %v2610 = vunpack.c.h.b16 %v2499
        %v2611 = vunpack.c.l.b16 %v2500
        %v2612 = vunpack.c.h.b16 %v2500
        %v2613 = vunpack.c.l.b16 %v2501
        %v2614 = vunpack.c.h.b16 %v2501
        %v2615 = vunpack.c.l.b16 %v2502
        %v2616 = vunpack.c.h.b16 %v2502
        %v2617 = vunpack.c.l.b16 %v2503
        %v2618 = vunpack.c.h.b16 %v2503
        %v2619 = vunpack.c.l.b16 %v2504
        %v2620 = vunpack.c.h.b16 %v2504
        %v2621 = vunpack.c.l.b16 %v2505
        %v2622 = vunpack.c.h.b16 %v2505
        %v2623 = vunpack.c.l.b16 %v2506
        %v2624 = vunpack.c.h.b16 %v2506
        %v2625 = vpack.c.b16 %v2565, %v2561
        %v2626 = vpack.c.b16 %v2566, %v2562
        %v2627 = vpack.c.b16 %v2567, %v2563
        %v2628 = vpack.c.b16 %v2568, %v2564
        %v2629 = vpack.c.b16 %v2573, %v2569
        %v2630 = vpack.c.b16 %v2574, %v2570
        %v2631 = vpack.c.b16 %v2575, %v2571
        %v2632 = vpack.c.b16 %v2576, %v2572
        %v2633 = vpack.c.b16 %v2581, %v2577
        %v2634 = vpack.c.b16 %v2582, %v2578
        %v2635 = vpack.c.b16 %v2583, %v2579
        %v2636 = vpack.c.b16 %v2584, %v2580
        %v2637 = vpack.c.b16 %v2589, %v2585
        %v2638 = vpack.c.b16 %v2590, %v2586
        %v2639 = vpack.c.b16 %v2591, %v2587
        %v2640 = vpack.c.b16 %v2592, %v2588
        %v2641 = vpack.c.b16 %v2597, %v2593
        %v2642 = vpack.c.b16 %v2598, %v2594
        %v2643 = vpack.c.b16 %v2599, %v2595
        %v2644 = vpack.c.b16 %v2600, %v2596
        %v2645 = vpack.c.b16 %v2605, %v2601
        %v2646 = vpack.c.b16 %v2606, %v2602
        %v2647 = vpack.c.b16 %v2607, %v2603
        %v2648 = vpack.c.b16 %v2608, %v2604
        %v2649 = vpack.c.b16 %v2613, %v2609
        %v2650 = vpack.c.b16 %v2614, %v2610
        %v2651 = vpack.c.b16 %v2615, %v2611
        %v2652 = vpack.c.b16 %v2616, %v2612
        %v2653 = vpack.c.b16 %v2621, %v2617
        %v2654 = vpack.c.b16 %v2622, %v2618
        %v2655 = vpack.c.b16 %v2623, %v2619
        %v2656 = vpack.c.b16 %v2624, %v2620
        %2689 = vmatprep.subr.bf16.mxu0 %v2626
        %2690 = vmatpush1.bf16.msra.mxu0 %v2625
        %2691 = vmatprep.subr.bf16.mxu0 %v2630
        %2692 = vmatpush1.bf16.msra.mxu0 %v2629
        %2693 = vmatprep.subr.bf16.mxu0 %v2634
        %2694 = vmatpush1.bf16.msra.mxu0 %v2633
        %2695 = vmatprep.subr.bf16.mxu0 %v2638
        %2696 = vmatpush1.bf16.msra.mxu0 %v2637
        %2697 = vmatprep.subr.bf16.mxu0 %v2642
        %2698 = vmatpush1.bf16.msra.mxu0 %v2641
        %2699 = vmatprep.subr.bf16.mxu0 %v2646
        %2700 = vmatpush1.bf16.msra.mxu0 %v2645
        %2701 = vmatprep.subr.bf16.mxu0 %v2650
        %2702 = vmatpush1.bf16.msra.mxu0 %v2649
        %2703 = vmatprep.subr.bf16.mxu0 %v2654
        %2704 = vmatpush1.bf16.msra.mxu0 %v2653
        %2705 = vmatprep.subr.bf16.mxu0 0
        %2706 = vmatpush1.bf16.msra.mxu0 0
        %2707 = vmatprep.subr.bf16.mxu0 0
        %2708 = vmatpush1.bf16.msra.mxu0 0
        %2709 = vmatprep.subr.bf16.mxu0 0
        %2710 = vmatpush1.bf16.msra.mxu0 0
        %2711 = vmatprep.subr.bf16.mxu0 0
        %2712 = vmatpush1.bf16.msra.mxu0 0
        %2713 = vmatprep.subr.bf16.mxu0 0
        %2714 = vmatpush1.bf16.msra.mxu0 0
        %2715 = vmatprep.subr.bf16.mxu0 0
        %2716 = vmatpush1.bf16.msra.mxu0 0
        %2717 = vmatprep.subr.bf16.mxu0 0
        %2718 = vmatpush1.bf16.msra.mxu0 0
        %2719 = vmatprep.subr.bf16.mxu0 0
        %2720 = vmatpush1.bf16.msra.mxu0 0
        %2721 = vmatprep.mubr.bf16.mxu0 0
        %2722 = vmatmul.mubr.bf16.gmra.mrb[0].mxu0 %v2474
        %v2723 = vpop.f32.mrb[0].mxu0
        %v2724 = vadd.f32 %v2512, %v2723
        %v2725 = vpop.f32.mrb[0].mxu0
        %v2726 = vadd.f32 %v2516, %v2725
        %v2727 = vpop.f32.mrb[0].mxu0
        %v2728 = vadd.f32 %v2512, %v2727
        %v2729 = vpop.f32.mrb[0].mxu0
        %v2730 = vadd.f32 %v2516, %v2729
        %2731 = vdwg.mxu0
        %2732 = vmatprep.subr.bf16.mxu0 %v2628
        %2733 = vmatpush1.bf16.msra.mxu0 %v2627
        %2734 = vmatprep.subr.bf16.mxu0 %v2632
        %2735 = vmatpush1.bf16.msra.mxu0 %v2631
        %2736 = vmatprep.subr.bf16.mxu0 %v2636
        %2737 = vmatpush1.bf16.msra.mxu0 %v2635
        %2738 = vmatprep.subr.bf16.mxu0 %v2640
        %2739 = vmatpush1.bf16.msra.mxu0 %v2639
        %2740 = vmatprep.subr.bf16.mxu0 %v2644
        %2741 = vmatpush1.bf16.msra.mxu0 %v2643
        %2742 = vmatprep.subr.bf16.mxu0 %v2648
        %2743 = vmatpush1.bf16.msra.mxu0 %v2647
        %2744 = vmatprep.subr.bf16.mxu0 %v2652
        %2745 = vmatpush1.bf16.msra.mxu0 %v2651
        %2746 = vmatprep.subr.bf16.mxu0 %v2656
        %2747 = vmatpush1.bf16.msra.mxu0 %v2655
        %2748 = vmatprep.subr.bf16.mxu0 0
        %2749 = vmatpush1.bf16.msra.mxu0 0
        %2750 = vmatprep.subr.bf16.mxu0 0
        %2751 = vmatpush1.bf16.msra.mxu0 0
        %2752 = vmatprep.subr.bf16.mxu0 0
        %2753 = vmatpush1.bf16.msra.mxu0 0
        %2754 = vmatprep.subr.bf16.mxu0 0
        %2755 = vmatpush1.bf16.msra.mxu0 0
        %2756 = vmatprep.subr.bf16.mxu0 0
        %2757 = vmatpush1.bf16.msra.mxu0 0
        %2758 = vmatprep.subr.bf16.mxu0 0
        %2759 = vmatpush1.bf16.msra.mxu0 0
        %2760 = vmatprep.subr.bf16.mxu0 0
        %2761 = vmatpush1.bf16.msra.mxu0 0
        %2762 = vmatprep.subr.bf16.mxu0 0
        %2763 = vmatpush1.bf16.msra.mxu0 0
        %2764 = vmatprep.mubr.bf16.mxu0 0
        %2765 = vmatmul.mubr.bf16.gmra.mrb[0].mxu0 %v2474
        %v2766 = vpop.f32.mrb[0].mxu0
        %v2767 = vadd.f32 %v2520, %v2766
        %v2768 = vpop.f32.mrb[0].mxu0
        %v2769 = vadd.f32 %v2524, %v2768
        %v2770 = vpop.f32.mrb[0].mxu0
        %v2771 = vadd.f32 %v2520, %v2770
        %v2772 = vpop.f32.mrb[0].mxu0
        %v2773 = vadd.f32 %v2524, %v2772
        %2774 = vdwg.mxu0
        %v2775 = vmax.f32 %v2724, 0.0
        %v2776 = vmax.f32 %v2726, 0.0
        %v2777 = vmax.f32 %v2767, 0.0
        %v2778 = vmax.f32 %v2769, 0.0
        %v2779 = vmax.f32 %v2728, 0.0
        %v2780 = vmax.f32 %v2730, 0.0
        %v2781 = vmax.f32 %v2771, 0.0
        %v2782 = vmax.f32 %v2773, 0.0
        %v2783 = vpack.c.bf16 %v2779, %v2775
        %v2784 = vpack.c.bf16 %v2780, %v2776
        %v2785 = vpack.c.bf16 %v2781, %v2777
        %v2786 = vpack.c.bf16 %v2782, %v2778
        %v2787 = vld [vmem:[%s8] sm:$0xf]
        %v2788 = vld [vmem:[%s8 + $0x4] sm:$0xf]
        %v2789 = vld [vmem:[%s8 + $0x8] sm:$0xf]
        %v2790 = vld [vmem:[%s8 + $0xc] sm:$0xf]
        %v2791 = vld [vmem:[%s8 + $0x10] sm:$0xf]
        %v2792 = vld [vmem:[%s8 + $0x14] sm:$0xf]
        %v2793 = vld [vmem:[%s8 + $0x18] sm:$0xf]
        %v2794 = vld [vmem:[%s8 + $0x1c] sm:$0xf]
        %v2795 = vld [vmem:[%s8 + $0x20] sm:$0xf]
        %v2796 = vld [vmem:[%s8 + $0x24] sm:$0xf]
        %v2797 = vld [vmem:[%s8 + $0x28] sm:$0xf]
        %v2798 = vld [vmem:[%s8 + $0x2c] sm:$0xf]
        %v2799 = vld [vmem:[%s8 + $0x30] sm:$0xf]
        %v2800 = vld [vmem:[%s8 + $0x34] sm:$0xf]
        %v2801 = vld [vmem:[%s8 + $0x38] sm:$0xf]
        %v2802 = vld [vmem:[%s8 + $0x3c] sm:$0xf]
        %v2803 = vld [vmem:[%s8 + $0x40] sm:$0xf]
        %v2804 = vld [vmem:[%s8 + $0x44] sm:$0xf]
        %v2805 = vld [vmem:[%s8 + $0x48] sm:$0xf]
        %v2806 = vld [vmem:[%s8 + $0x4c] sm:$0xf]
        %v2807 = vld [vmem:[%s8 + $0x50] sm:$0xf]
        %v2808 = vld [vmem:[%s8 + $0x54] sm:$0xf]
        %v2809 = vld [vmem:[%s8 + $0x58] sm:$0xf]
        %v2810 = vld [vmem:[%s8 + $0x5c] sm:$0xf]
        %v2811 = vld [vmem:[%s8 + $0x60] sm:$0xf]
        %v2812 = vld [vmem:[%s8 + $0x64] sm:$0xf]
        %v2813 = vld [vmem:[%s8 + $0x68] sm:$0xf]
        %v2814 = vld [vmem:[%s8 + $0x6c] sm:$0xf]
        %v2815 = vld [vmem:[%s8 + $0x70] sm:$0xf]
        %v2816 = vld [vmem:[%s8 + $0x74] sm:$0xf]
        %v2817 = vld [vmem:[%s8 + $0x78] sm:$0xf]
        %v2818 = vld [vmem:[%s8 + $0x7c] sm:$0xf]
        %v2819 = vld [vmem:[%s8 + $0x80] sm:$0xf]
        %v2820 = vld [vmem:[%s8 + $0x84] sm:$0xf]
        %v2821 = vld [vmem:[%s8 + $0x88] sm:$0xf]
        %v2822 = vld [vmem:[%s8 + $0x8c] sm:$0xf]
        %v2823 = vld [vmem:[%s8 + $0x90] sm:$0xf]
        %v2824 = vld [vmem:[%s8 + $0x94] sm:$0xf]
        %v2825 = vld [vmem:[%s8 + $0x98] sm:$0xf]
        %v2826 = vld [vmem:[%s8 + $0x9c] sm:$0xf]
        %v2827 = vld [vmem:[%s8 + $0xa0] sm:$0xf]
        %v2828 = vld [vmem:[%s8 + $0xa4] sm:$0xf]
        %v2829 = vld [vmem:[%s8 + $0xa8] sm:$0xf]
        %v2830 = vld [vmem:[%s8 + $0xac] sm:$0xf]
        %v2831 = vld [vmem:[%s8 + $0xb0] sm:$0xf]
        %v2832 = vld [vmem:[%s8 + $0xb4] sm:$0xf]
        %v2833 = vld [vmem:[%s8 + $0xb8] sm:$0xf]
        %v2834 = vld [vmem:[%s8 + $0xbc] sm:$0xf]
        %v2835 = vld [vmem:[%s8 + $0xc0] sm:$0xf]
        %v2836 = vld [vmem:[%s8 + $0xc4] sm:$0xf]
        %v2837 = vld [vmem:[%s8 + $0xc8] sm:$0xf]
        %v2838 = vld [vmem:[%s8 + $0xcc] sm:$0xf]
        %v2839 = vld [vmem:[%s8 + $0xd0] sm:$0xf]
        %v2840 = vld [vmem:[%s8 + $0xd4] sm:$0xf]
        %v2841 = vld [vmem:[%s8 + $0xd8] sm:$0xf]
        %v2842 = vld [vmem:[%s8 + $0xdc] sm:$0xf]
        %v2843 = vld [vmem:[%s8 + $0xe0] sm:$0xf]
        %v2844 = vld [vmem:[%s8 + $0xe4] sm:$0xf]
        %v2845 = vld [vmem:[%s8 + $0xe8] sm:$0xf]
        %v2846 = vld [vmem:[%s8 + $0xec] sm:$0xf]
        %v2847 = vld [vmem:[%s8 + $0xf0] sm:$0xf]
        %v2848 = vld [vmem:[%s8 + $0xf4] sm:$0xf]
        %v2849 = vld [vmem:[%s8 + $0xf8] sm:$0xf]
        %v2850 = vld [vmem:[%s8 + $0xfc] sm:$0xf]
        %v2851 = vld [vmem:[%s9] sm:$0x1]
        %v2853 = vlaneseq
        %v2854 = vshrl.u32 %v2853, 7
        %v2855 = vsub.s32 0, %v2854
        %v2856 = vrot.slane %v2851, %v2855
        %v2922 = vunpack.c.l.b16 %v2787
        %v2923 = vunpack.c.l.b16 %v2788
        %v2924 = vunpack.c.l.b16 %v2789
        %v2925 = vunpack.c.l.b16 %v2790
        %v2926 = vunpack.c.l.b16 %v2791
        %v2927 = vunpack.c.l.b16 %v2792
        %v2928 = vunpack.c.l.b16 %v2793
        %v2929 = vunpack.c.l.b16 %v2794
        %v2930 = vunpack.c.l.b16 %v2795
        %v2931 = vunpack.c.l.b16 %v2796
        %v2932 = vunpack.c.l.b16 %v2797
        %v2933 = vunpack.c.l.b16 %v2798
        %v2934 = vunpack.c.l.b16 %v2799
        %v2935 = vunpack.c.l.b16 %v2800
        %v2936 = vunpack.c.l.b16 %v2801
        %v2937 = vunpack.c.l.b16 %v2802
        %v2938 = vunpack.c.l.b16 %v2803
        %v2939 = vunpack.c.l.b16 %v2804
        %v2940 = vunpack.c.l.b16 %v2805
        %v2941 = vunpack.c.l.b16 %v2806
        %v2942 = vunpack.c.l.b16 %v2807
        %v2943 = vunpack.c.l.b16 %v2808
        %v2944 = vunpack.c.l.b16 %v2809
        %v2945 = vunpack.c.l.b16 %v2810
        %v2946 = vunpack.c.l.b16 %v2811
        %v2947 = vunpack.c.l.b16 %v2812
        %v2948 = vunpack.c.l.b16 %v2813
        %v2949 = vunpack.c.l.b16 %v2814
        %v2950 = vunpack.c.l.b16 %v2815
        %v2951 = vunpack.c.l.b16 %v2816
        %v2952 = vunpack.c.l.b16 %v2817
        %v2953 = vunpack.c.l.b16 %v2818
        %v2954 = vunpack.c.l.b16 %v2819
        %v2955 = vunpack.c.l.b16 %v2820
        %v2956 = vunpack.c.l.b16 %v2821
        %v2957 = vunpack.c.l.b16 %v2822
        %v2958 = vunpack.c.l.b16 %v2823
        %v2959 = vunpack.c.l.b16 %v2824
        %v2960 = vunpack.c.l.b16 %v2825
        %v2961 = vunpack.c.l.b16 %v2826
        %v2962 = vunpack.c.l.b16 %v2827
        %v2963 = vunpack.c.l.b16 %v2828
        %v2964 = vunpack.c.l.b16 %v2829
        %v2965 = vunpack.c.l.b16 %v2830
        %v2966 = vunpack.c.l.b16 %v2831
        %v2967 = vunpack.c.l.b16 %v2832
        %v2968 = vunpack.c.l.b16 %v2833
        %v2969 = vunpack.c.l.b16 %v2834
        %v2970 = vunpack.c.l.b16 %v2835
        %v2971 = vunpack.c.l.b16 %v2836
        %v2972 = vunpack.c.l.b16 %v2837
        %v2973 = vunpack.c.l.b16 %v2838
        %v2974 = vunpack.c.l.b16 %v2839
        %v2975 = vunpack.c.l.b16 %v2840
        %v2976 = vunpack.c.l.b16 %v2841
        %v2977 = vunpack.c.l.b16 %v2842
        %v2978 = vunpack.c.l.b16 %v2843
        %v2979 = vunpack.c.l.b16 %v2844
        %v2980 = vunpack.c.l.b16 %v2845
        %v2981 = vunpack.c.l.b16 %v2846
        %v2982 = vunpack.c.l.b16 %v2847
        %v2983 = vunpack.c.l.b16 %v2848
        %v2984 = vunpack.c.l.b16 %v2849
        %v2985 = vunpack.c.l.b16 %v2850
        %v2986 = vpack.c.b16 %v2923, %v2922
        %v2987 = vpack.c.b16 %v2925, %v2924
        %v2988 = vpack.c.b16 %v2927, %v2926
        %v2989 = vpack.c.b16 %v2929, %v2928
        %v2990 = vpack.c.b16 %v2931, %v2930
        %v2991 = vpack.c.b16 %v2933, %v2932
        %v2992 = vpack.c.b16 %v2935, %v2934
        %v2993 = vpack.c.b16 %v2937, %v2936
        %v2994 = vpack.c.b16 %v2939, %v2938
        %v2995 = vpack.c.b16 %v2941, %v2940
        %v2996 = vpack.c.b16 %v2943, %v2942
        %v2997 = vpack.c.b16 %v2945, %v2944
        %v2998 = vpack.c.b16 %v2947, %v2946
        %v2999 = vpack.c.b16 %v2949, %v2948
        %v3000 = vpack.c.b16 %v2951, %v2950
        %v3001 = vpack.c.b16 %v2953, %v2952
        %v3002 = vpack.c.b16 %v2955, %v2954
        %v3003 = vpack.c.b16 %v2957, %v2956
        %v3004 = vpack.c.b16 %v2959, %v2958
        %v3005 = vpack.c.b16 %v2961, %v2960
        %v3006 = vpack.c.b16 %v2963, %v2962
        %v3007 = vpack.c.b16 %v2965, %v2964
        %v3008 = vpack.c.b16 %v2967, %v2966
        %v3009 = vpack.c.b16 %v2969, %v2968
        %v3010 = vpack.c.b16 %v2971, %v2970
        %v3011 = vpack.c.b16 %v2973, %v2972
        %v3012 = vpack.c.b16 %v2975, %v2974
        %v3013 = vpack.c.b16 %v2977, %v2976
        %v3014 = vpack.c.b16 %v2979, %v2978
        %v3015 = vpack.c.b16 %v2981, %v2980
        %v3016 = vpack.c.b16 %v2983, %v2982
        %v3017 = vpack.c.b16 %v2985, %v2984
        %3050 = vmatprep.subr.bf16.mxu0 0
        %3051 = vmatpush1.bf16.msra.mxu0 %v2986
        %3052 = vmatprep.subr.bf16.mxu0 0
        %3053 = vmatpush1.bf16.msra.mxu0 %v2987
        %3054 = vmatprep.subr.bf16.mxu0 0
        %3055 = vmatpush1.bf16.msra.mxu0 %v2988
        %3056 = vmatprep.subr.bf16.mxu0 0
        %3057 = vmatpush1.bf16.msra.mxu0 %v2989
        %3058 = vmatprep.subr.bf16.mxu0 0
        %3059 = vmatpush1.bf16.msra.mxu0 %v2990
        %3060 = vmatprep.subr.bf16.mxu0 0
        %3061 = vmatpush1.bf16.msra.mxu0 %v2991
        %3062 = vmatprep.subr.bf16.mxu0 0
        %3063 = vmatpush1.bf16.msra.mxu0 %v2992
        %3064 = vmatprep.subr.bf16.mxu0 0
        %3065 = vmatpush1.bf16.msra.mxu0 %v2993
        %3066 = vmatprep.subr.bf16.mxu0 0
        %3067 = vmatpush1.bf16.msra.mxu0 %v2994
        %3068 = vmatprep.subr.bf16.mxu0 0
        %3069 = vmatpush1.bf16.msra.mxu0 %v2995
        %3070 = vmatprep.subr.bf16.mxu0 0
        %3071 = vmatpush1.bf16.msra.mxu0 %v2996
        %3072 = vmatprep.subr.bf16.mxu0 0
        %3073 = vmatpush1.bf16.msra.mxu0 %v2997
        %3074 = vmatprep.subr.bf16.mxu0 0
        %3075 = vmatpush1.bf16.msra.mxu0 %v2998
        %3076 = vmatprep.subr.bf16.mxu0 0
        %3077 = vmatpush1.bf16.msra.mxu0 %v2999
        %3078 = vmatprep.subr.bf16.mxu0 0
        %3079 = vmatpush1.bf16.msra.mxu0 %v3000
        %3080 = vmatprep.subr.bf16.mxu0 0
        %3081 = vmatpush1.bf16.msra.mxu0 %v3001
        %3082 = vmatprep.mubr.bf16.mxu0 %v2784
        %3083 = vmatmul.mubr.bf16.gmra.mrb[0].mxu0 %v2783
        %v3084 = vpop.f32.mrb[0].mxu0
        %v3085 = vadd.f32 %v2856, %v3084
        %v3086 = vpop.f32.mrb[0].mxu0
        %v3087 = vpop.f32.mrb[0].mxu0
        %v3088 = vadd.f32 %v2856, %v3087
        %v3089 = vpop.f32.mrb[0].mxu0
        %3090 = vdwg.mxu0
        %3091 = vmatprep.subr.bf16.mxu0 0
        %3092 = vmatpush1.bf16.msra.mxu0 %v3002
        %3093 = vmatprep.subr.bf16.mxu0 0
        %3094 = vmatpush1.bf16.msra.mxu0 %v3003
        %3095 = vmatprep.subr.bf16.mxu0 0
        %3096 = vmatpush1.bf16.msra.mxu0 %v3004
        %3097 = vmatprep.subr.bf16.mxu0 0
        %3098 = vmatpush1.bf16.msra.mxu0 %v3005
        %3099 = vmatprep.subr.bf16.mxu0 0
        %3100 = vmatpush1.bf16.msra.mxu0 %v3006
        %3101 = vmatprep.subr.bf16.mxu0 0
        %3102 = vmatpush1.bf16.msra.mxu0 %v3007
        %3103 = vmatprep.subr.bf16.mxu0 0
        %3104 = vmatpush1.bf16.msra.mxu0 %v3008
        %3105 = vmatprep.subr.bf16.mxu0 0
        %3106 = vmatpush1.bf16.msra.mxu0 %v3009
        %3107 = vmatprep.subr.bf16.mxu0 0
        %3108 = vmatpush1.bf16.msra.mxu0 %v3010
        %3109 = vmatprep.subr.bf16.mxu0 0
        %3110 = vmatpush1.bf16.msra.mxu0 %v3011
        %3111 = vmatprep.subr.bf16.mxu0 0
        %3112 = vmatpush1.bf16.msra.mxu0 %v3012
        %3113 = vmatprep.subr.bf16.mxu0 0
        %3114 = vmatpush1.bf16.msra.mxu0 %v3013
        %3115 = vmatprep.subr.bf16.mxu0 0
        %3116 = vmatpush1.bf16.msra.mxu0 %v3014
        %3117 = vmatprep.subr.bf16.mxu0 0
        %3118 = vmatpush1.bf16.msra.mxu0 %v3015
        %3119 = vmatprep.subr.bf16.mxu0 0
        %3120 = vmatpush1.bf16.msra.mxu0 %v3016
        %3121 = vmatprep.subr.bf16.mxu0 0
        %3122 = vmatpush1.bf16.msra.mxu0 %v3017
        %3123 = vmatprep.mubr.bf16.mxu0 %v2786
        %3124 = vmatmul.mubr.bf16.gmra.mrb[0].mxu0 %v2785
        %v3125 = vpop.f32.mrb[0].mxu0
        %v3126 = vadd.f32 %v3085, %v3125
        %v3127 = vpop.f32.mrb[0].mxu0
        %v3128 = vpop.f32.mrb[0].mxu0
        %v3129 = vadd.f32 %v3088, %v3128
        %v3130 = vpop.f32.mrb[0].mxu0
        %3131 = vdwg.mxu0
        %v3132 = vadd.f32 %v2472, %v3126
        %v3133 = vadd.f32 %v2473, %v3129
        %3134 = vadd.xlane.f32.xlu0 %v3132
        %v3135 = vpop.xlane.xlu0 %3134
        %3136 = vadd.xlane.f32.xlu0 %v3133
        %v3137 = vpop.xlane.xlu0 %3136
        %v3138 = vmul.f32 %v3135, %v2439
        %v3139 = vmul.f32 %v3137, %v2439
        %v3140 = vsub.f32 %v3132, %v3138
        %v3141 = vsub.f32 %v3133, %v3139
        %v3142 = vmul.f32 %v3140, %v3140
        %v3143 = vmul.f32 %v3141, %v3141
        %3144 = vadd.xlane.f32.xlu0 %v3142
        %v3145 = vpop.xlane.xlu0 %3144
        %3146 = vadd.xlane.f32.xlu0 %v3143
        %v3147 = vpop.xlane.xlu0 %3146
        %v3148 = vmul.f32 %v3145, %v2439
        %v3149 = vmul.f32 %v3147, %v2439
        %v3150 = vadd.f32 %v3148, 1e-05
        %v3151 = vadd.f32 %v3149, 1e-05
        %v3152 = vrsqrt.pop %v3150
        %v3153 = vrsqrt.pop %v3151
        %v3154 = vmul.f32 %v3140, %v3152
        %v3155 = vmul.f32 %v3141, %v3153
        %v3156 = vmul.f32 %v3154, %v2462
        %v3157 = vmul.f32 %v3155, %v2462
        %v3158 = vadd.f32 %v3156, %v2470
        %v3159 = vadd.f32 %v3157, %v2470
        %3160 = vst [vmem:[%s368] sm:$0xff] %v3158
        %3161 = vst [vmem:[%s368 + $0x8] sm:$0xff] %v3159
        %s3162 = sand.u32 %s252, 1
        %s3163 = scalar_lea.sflag [#allocation3], %s3162
        %s3164 = sand.u32 %s252, 1
        %s3165 = smul.addr %s3164, 16
        %s3166 = scalar_lea.vmem [#allocation2], %s3165
        // Predicated region
        $region61: #{transformer_encoder_layer.1} parent=59 // pred_check
          %p3167 = pneg %p262
        $region62: #{transformer_encoder_layer.1} parent=59 // pred_check_branch
          %3169 = sbr.rel (%p3167) target = $region64
        $region63: #{transformer_encoder_layer.1} parent=59 // pred_region
          %s3170 = smul.u32 2, %s24
          %s3172 = ssub.s32 256, 256
          %3173 = vsyncadd %s3163, %s3172
          %s3174 = smul.addr %s3170, 128
          %s3175 = scalar_lea.hbm %s10, %s3174
          %s3176 = sshll.u32 %s3166, 4
          %s3177 = int_to_ptr.vmem [resolvable:$true] %s3176
          %3182 = dma.vmem_to_hbm [thread:$0]  %s3177, 256, %s3175, %s3163, 128, 128, 8
        $region64: #{transformer_encoder_layer.1} parent=59 // pred_fallthru
          _
      $region60: #{transformer_encoder_layer.1} parent=5 // pred_fallthru
        _
      %p3183 = scmp.le.s32.totalorder 2, %s19
      // Predicated region
      $region65: #{transformer_encoder_layer.1} parent=5 // pred_check
        %p3184 = pneg %p3183
      $region66: #{transformer_encoder_layer.1} parent=5 // pred_check_branch
        %3186 = sbr.rel (%p3184) target = $region68
      $region67: #{transformer_encoder_layer.1} parent=5 // pred_region
        %s3187 = ssub.s32 %s19, 2
        // Predicated region
        $region69: #{transformer_encoder_layer.1} parent=67 // pred_check
          %p3188 = pneg %p268
        $region70: #{transformer_encoder_layer.1} parent=67 // pred_check_branch
          %3190 = sbr.rel (%p3188) target = $region72
        $region71: #{transformer_encoder_layer.1} parent=67 // pred_region
          %s3191 = sand.u32 %s253, 1
          %s3192 = scalar_lea.sflag [#allocation3], %s3191
          %s3193 = sand.u32 %s253, 1
          %s3194 = smul.addr %s3193, 16
          %s3195 = scalar_lea.vmem [#allocation2], %s3194
          %3196 = dma.done %s3192, 256
        $region72: #{transformer_encoder_layer.1} parent=67 // pred_fallthru
          _
      $region68: #{transformer_encoder_layer.1} parent=5 // pred_fallthru
        _
    $region6: #{transformer_encoder_layer.1} parent=1 // loop_footer
      %s23 = sadd.s32 1, %s19
    $region7: #{transformer_encoder_layer.1} parent=1 // loop_footer_branch
      %18 = sbr.rel target = $region3
    $region8: #{transformer_encoder_layer.1} parent=1 // loop_exit
      _
    %3197 = vsyncpa [#allocation3], 1
    %s3198 = scalar_lea.sflag [#allocation3], 1
    %3199 = vsyncpa %s3198, 1

</llo_original>
